<compile_context>
chip_gen: v7x
topology: tpu7x:2x2x1
jax: 0.10.0
libtpu: 0.0.40
codegen_flags: <defaults>
</compile_context>

<pallas_src>
import functools
from typing import NamedTuple

import jax
import jax.numpy as jnp
from jax import lax
from jax.experimental import pallas as pl
from jax.experimental.pallas import tpu as pltpu


LANES = 128          # lane width; the target dimension is zero-padded to this
_SUBLANES = 8        # f32 sublane granularity (rows per group / per vst)


def _round_up(x, m):
    return (x + m - 1) // m * m


def _pick_b_tile(batch):
    # Larger tiles amortize the ~0.35 us per-grid-step overhead, but keep the
    # grid length >= 2 when batch allows so dimension_semantics=("parallel",)
    # can split batch tiles across v7x's two TensorCores (no-op on v5e/v6e).
    for bt in (64, 32, 16):
        if batch >= 2 * bt:
            return bt
    return _SUBLANES


class LogRegParams(NamedTuple):
    table: jax.Array      # (V_pad, TP)  folded emb_matrix @ W, zero-padded
    bias: jax.Array       # (1, TP)      zero-padded fc bias, f32
    vocab_size: int
    ntargets: int


def init_logreg(emb_matrix, fc_w, fc_b, *, table_dtype=jnp.float32):
    """One-time precompute, hoisted out of the per-call forward path.

    mean-over-seq and the linear layer commute, so the frozen embedding matrix
    and the fc weight fold into a single lookup table  EW = emb_matrix @ W of
    shape (V, T).  The forward kernel then only gathers EW rows and reduces.
    On v6e/v7x pass table_dtype=jnp.bfloat16 to halve resident VMEM (rows are
    upcast to f32 inside the kernel) when precision allows.
    """
    V, D = emb_matrix.shape
    T = fc_w.shape[1]
    TP = _round_up(max(T, 1), LANES)          # lane-dense output width
    V_pad = _round_up(V, _SUBLANES)           # sublane-aligned row count

    # One-time fold on the MXU (f32 here for exactness; a bf16 x bf16 -> f32
    # fold is ~2x faster on v6e/v7x if the downstream precision allows it).
    table = jnp.dot(emb_matrix.astype(jnp.float32), fc_w.astype(jnp.float32),
                    preferred_element_type=jnp.float32)                 # (V, T)
    table_p = jnp.pad(table, ((0, V_pad - V), (0, TP - T))).astype(table_dtype)
    bias_p = jnp.pad(fc_b.astype(jnp.float32), (0, TP - T)).reshape(1, TP)
    return LogRegParams(table=table_p, bias=bias_p, vocab_size=V, ntargets=T)


def _logreg_kernel(ids_ref, table_ref, bias_ref, out_ref, *,
                   seq_len, b_pad, b_tile):
    """Fused gather + seq-sum + (1/S) scale + bias for one batch tile.

    ids_ref:   (seq_len * b_pad,) int32 in SMEM (scalar prefetch), row-major (s, b).
    table_ref: (V_pad, TP) VMEM -- rows of emb_matrix @ W, zero-padded, resident.
    bias_ref:  (1, TP) f32 VMEM  -- zero-padded fc bias, resident.
    out_ref:   (b_tile, TP) f32 logits tile.
    """
    i = pl.program_id(0)                       # batch-tile index
    col0 = i * b_tile
    inv_s = jnp.float32(1.0 / seq_len)
    bias = bias_ref[...]                       # (1, TP), hoisted out of the loops
    tp = out_ref.shape[1]
    unroll = min(8, seq_len)                   # fixed partial unroll of the seq loop

    # Static sub-groups of 8 rows: at most 8 (1,TP) accumulator vregs live at a
    # time, regardless of b_tile.
    for g in range(b_tile // _SUBLANES):
        base0 = col0 + g * _SUBLANES

        def body(s, accs, base0=base0):
            base = s * b_pad + base0
            # One scalar id load + one dynamic-row vld + one vadd per batch row;
            # the binding resource is the scalar slot, VPU/XLU have slack.
            return tuple(
                acc + table_ref[pl.ds(ids_ref[base + r], 1), :].astype(jnp.float32)
                for r, acc in enumerate(accs)
            )

        init = tuple(jnp.zeros((1, tp), jnp.float32) for _ in range(_SUBLANES))
        accs = lax.fori_loop(0, seq_len, body, init, unroll=unroll)

        # Finalize: stack 8 rows -> one (8, TP) block (XLU slot has slack), apply
        # the mean scale + bias once, and do a single full-tile store.
        block = jnp.concatenate(accs, axis=0)                      # (8, TP)
        out_ref[g * _SUBLANES:(g + 1) * _SUBLANES, :] = block * inv_s + bias


def logreg_forward(params: LogRegParams, token_ids):
    """token_ids: (S, B) int -> logits (B, ntargets) float32."""
    S, B = token_ids.shape
    V_pad, TP = params.table.shape
    b_tile = _pick_b_tile(B)
    B_pad = _round_up(max(B, 1), b_tile)

    # Clamp ids so a bad token id can never read out-of-bounds VMEM (no runtime
    # bounds check on VMEM refs).
    ids = jnp.clip(token_ids.astype(jnp.int32), 0, params.vocab_size - 1)
    ids = jnp.pad(ids, ((0, 0), (0, B_pad - B)))     # padded cols -> row 0 (discarded)
    ids_flat = ids.reshape(S * B_pad)                # row-major (s, b) SMEM scalars
    # Note: for very large S*B the ids should instead be passed as a per-tile
    # blocked SMEM input (scalar prefetch keeps the whole array in SMEM); at
    # these scales scalar prefetch is fine and the ids are never re-DMA'd.

    kernel = functools.partial(_logreg_kernel, seq_len=S, b_pad=B_pad, b_tile=b_tile)

    # Scoped-VMEM budget: resident table (+ headroom); defaults (16/32 MiB) would
    # otherwise evict realistic vocabs long before physical VMEM is exhausted.
    table_bytes = params.table.size * params.table.dtype.itemsize
    vmem_limit = int(min(max(2 * table_bytes + (4 << 20), 32 << 20), 112 << 20))

    def build(single_buffer_resident):
        resident_kwargs = (
            dict(pipeline_mode=pl.Buffered(1)) if single_buffer_resident else {}
        )
        return pl.pallas_call(
            kernel,
            out_shape=jax.ShapeDtypeStruct((B_pad, TP), jnp.float32),
            grid_spec=pltpu.PrefetchScalarGridSpec(
                num_scalar_prefetch=1,
                grid=(B_pad // b_tile,),
                in_specs=[
                    # Constant index_map => table/bias stay VMEM-resident across
                    # grid steps; Buffered(1) avoids allocating a useless second
                    # copy of the table (matters on v7x's 64 MiB VMEM).
                    pl.BlockSpec((V_pad, TP), lambda i, ids: (0, 0),
                                 **resident_kwargs),
                    pl.BlockSpec((1, TP), lambda i, ids: (0, 0),
                                 **resident_kwargs),
                ],
                out_specs=pl.BlockSpec((b_tile, TP), lambda i, ids: (i, 0)),
            ),
            compiler_params=pltpu.CompilerParams(
                dimension_semantics=("parallel",),   # batch tiles -> both TCs (v7x)
                vmem_limit_bytes=vmem_limit,
            ),
        )

    try:
        out = build(True)(ids_flat, params.table, params.bias)
    except Exception:
        # pipeline_mode=pl.Buffered(1) unsupported on this jax/libtpu combo:
        # fall back to default double-buffering (identical results).
        out = build(False)(ids_flat, params.table, params.bias)

    return out[:B, :params.ntargets]


if __name__ == "__main__":
    # Small deterministic setup consistent with the module:
    # vocab_size=32, emb_dim=32 (vocab.vectors), ntargets=8, seq=8, batch=2.
    seq_len, batch = 8, 2
    vocab_size, emb_dim, ntargets = 32, 32, 8

    key = jax.random.PRNGKey(0)
    k_emb, k_w, k_b, k_ids = jax.random.split(key, 4)

    emb_matrix = jax.random.normal(k_emb, (vocab_size, emb_dim), dtype=jnp.float32)
    # nn.Linear(emb_dim, ntargets) weight stored pre-transposed as (emb_dim, ntargets).
    fc_w = jax.random.normal(k_w, (emb_dim, ntargets), dtype=jnp.float32) * 0.1
    fc_b = jax.random.normal(k_b, (ntargets,), dtype=jnp.float32) * 0.1
    token_ids = jax.random.randint(k_ids, (seq_len, batch), 0, vocab_size,
                                   dtype=jnp.int32)

    # One-time fold of the frozen embedding and the fc weight (not in the
    # per-call forward path).
    params = init_logreg(emb_matrix, fc_w, fc_b, table_dtype=jnp.float32)

    out = jax.block_until_ready(logreg_forward(params, token_ids))

    # Plain-JAX reference of the PyTorch forward: embed -> mean(dim=0) -> fc.
    ref = jnp.take(emb_matrix, token_ids, axis=0).mean(axis=0) @ fc_w + fc_b
    assert out.shape == (batch, ntargets)
    assert jnp.allclose(out, ref, atol=1e-4, rtol=1e-4), \
        float(jnp.max(jnp.abs(out - ref)))

    print("KERNEL_OK")
</pallas_src>

<mosaic_0001>
module attributes {stable_mosaic.version = 11 : i64} {
  func.func @_logreg_kernel(%arg0: i32, %arg1: memref<64xi32, #tpu.memory_space<smem>>, %arg2: memref<32x128xf32, #tpu.memory_space<vmem>>, %arg3: memref<1x128xf32, #tpu.memory_space<vmem>>, %arg4: memref<8x128xf32, #tpu.memory_space<vmem>>) attributes {dimension_semantics = [#tpu.dimension_semantics<parallel>], iteration_bounds = array<i64: 1>, scalar_prefetch = 1 : i64, scratch_operands = 0 : i64, tpu.core_type = #tpu.core_type<tc>, window_params = [{pipeline_mode = #tpu.pipeline_mode<synchronous>, transform_indices = @transform_0, window_bounds = array<i64: 32, 128>}, {pipeline_mode = #tpu.pipeline_mode<synchronous>, transform_indices = @transform_1, window_bounds = array<i64: 1, 128>}, {transform_indices = @transform_2, window_bounds = array<i64: 8, 128>}]} {
    %c8_i32 = arith.constant 8 : i32
    %0 = arith.muli %arg0, %c8_i32 : i32
    %c0 = arith.constant 0 : index
    %c0_0 = arith.constant 0 : index
    %1 = vector.load %arg3[%c0, %c0_0] : memref<1x128xf32, #tpu.memory_space<vmem>>, vector<1x128xf32>
    %c0_i32 = arith.constant 0 : i32
    %2 = arith.addi %0, %c0_i32 : i32
    %cst = arith.constant 0.000000e+00 : f32
    %3 = vector.broadcast %cst : f32 to vector<1x128xf32>
    %cst_1 = arith.constant 0.000000e+00 : f32
    %4 = vector.broadcast %cst_1 : f32 to vector<1x128xf32>
    %cst_2 = arith.constant 0.000000e+00 : f32
    %5 = vector.broadcast %cst_2 : f32 to vector<1x128xf32>
    %cst_3 = arith.constant 0.000000e+00 : f32
    %6 = vector.broadcast %cst_3 : f32 to vector<1x128xf32>
    %cst_4 = arith.constant 0.000000e+00 : f32
    %7 = vector.broadcast %cst_4 : f32 to vector<1x128xf32>
    %cst_5 = arith.constant 0.000000e+00 : f32
    %8 = vector.broadcast %cst_5 : f32 to vector<1x128xf32>
    %cst_6 = arith.constant 0.000000e+00 : f32
    %9 = vector.broadcast %cst_6 : f32 to vector<1x128xf32>
    %cst_7 = arith.constant 0.000000e+00 : f32
    %10 = vector.broadcast %cst_7 : f32 to vector<1x128xf32>
    %c0_i32_8 = arith.constant 0 : i32
    %c8_i32_9 = arith.constant 8 : i32
    %11 = arith.muli %c0_i32_8, %c8_i32_9 : i32
    %12 = arith.addi %11, %2 : i32
    %c0_i32_10 = arith.constant 0 : i32
    %13 = arith.addi %12, %c0_i32_10 : i32
    %14 = arith.index_cast %13 : i32 to index
    %15 = memref.load %arg1[%14] : memref<64xi32, #tpu.memory_space<smem>>
    %16 = arith.index_cast %15 : i32 to index
    %c0_11 = arith.constant 0 : index
    %17 = vector.load %arg2[%16, %c0_11] : memref<32x128xf32, #tpu.memory_space<vmem>>, vector<1x128xf32>
    %18 = arith.addf %3, %17 : vector<1x128xf32>
    %c1_i32 = arith.constant 1 : i32
    %19 = arith.addi %12, %c1_i32 : i32
    %20 = arith.index_cast %19 : i32 to index
    %21 = memref.load %arg1[%20] : memref<64xi32, #tpu.memory_space<smem>>
    %22 = arith.index_cast %21 : i32 to index
    %c0_12 = arith.constant 0 : index
    %23 = vector.load %arg2[%22, %c0_12] : memref<32x128xf32, #tpu.memory_space<vmem>>, vector<1x128xf32>
    %24 = arith.addf %4, %23 : vector<1x128xf32>
    %c2_i32 = arith.constant 2 : i32
    %25 = arith.addi %12, %c2_i32 : i32
    %26 = arith.index_cast %25 : i32 to index
    %27 = memref.load %arg1[%26] : memref<64xi32, #tpu.memory_space<smem>>
    %28 = arith.index_cast %27 : i32 to index
    %c0_13 = arith.constant 0 : index
    %29 = vector.load %arg2[%28, %c0_13] : memref<32x128xf32, #tpu.memory_space<vmem>>, vector<1x128xf32>
    %30 = arith.addf %5, %29 : vector<1x128xf32>
    %c3_i32 = arith.constant 3 : i32
    %31 = arith.addi %12, %c3_i32 : i32
    %32 = arith.index_cast %31 : i32 to index
    %33 = memref.load %arg1[%32] : memref<64xi32, #tpu.memory_space<smem>>
    %34 = arith.index_cast %33 : i32 to index
    %c0_14 = arith.constant 0 : index
    %35 = vector.load %arg2[%34, %c0_14] : memref<32x128xf32, #tpu.memory_space<vmem>>, vector<1x128xf32>
    %36 = arith.addf %6, %35 : vector<1x128xf32>
    %c4_i32 = arith.constant 4 : i32
    %37 = arith.addi %12, %c4_i32 : i32
    %38 = arith.index_cast %37 : i32 to index
    %39 = memref.load %arg1[%38] : memref<64xi32, #tpu.memory_space<smem>>
    %40 = arith.index_cast %39 : i32 to index
    %c0_15 = arith.constant 0 : index
    %41 = vector.load %arg2[%40, %c0_15] : memref<32x128xf32, #tpu.memory_space<vmem>>, vector<1x128xf32>
    %42 = arith.addf %7, %41 : vector<1x128xf32>
    %c5_i32 = arith.constant 5 : i32
    %43 = arith.addi %12, %c5_i32 : i32
    %44 = arith.index_cast %43 : i32 to index
    %45 = memref.load %arg1[%44] : memref<64xi32, #tpu.memory_space<smem>>
    %46 = arith.index_cast %45 : i32 to index
    %c0_16 = arith.constant 0 : index
    %47 = vector.load %arg2[%46, %c0_16] : memref<32x128xf32, #tpu.memory_space<vmem>>, vector<1x128xf32>
    %48 = arith.addf %8, %47 : vector<1x128xf32>
    %c6_i32 = arith.constant 6 : i32
    %49 = arith.addi %12, %c6_i32 : i32
    %50 = arith.index_cast %49 : i32 to index
    %51 = memref.load %arg1[%50] : memref<64xi32, #tpu.memory_space<smem>>
    %52 = arith.index_cast %51 : i32 to index
    %c0_17 = arith.constant 0 : index
    %53 = vector.load %arg2[%52, %c0_17] : memref<32x128xf32, #tpu.memory_space<vmem>>, vector<1x128xf32>
    %54 = arith.addf %9, %53 : vector<1x128xf32>
    %c7_i32 = arith.constant 7 : i32
    %55 = arith.addi %12, %c7_i32 : i32
    %56 = arith.index_cast %55 : i32 to index
    %57 = memref.load %arg1[%56] : memref<64xi32, #tpu.memory_space<smem>>
    %58 = arith.index_cast %57 : i32 to index
    %c0_18 = arith.constant 0 : index
    %59 = vector.load %arg2[%58, %c0_18] : memref<32x128xf32, #tpu.memory_space<vmem>>, vector<1x128xf32>
    %60 = arith.addf %10, %59 : vector<1x128xf32>
    %c1_i32_19 = arith.constant 1 : i32
    %c8_i32_20 = arith.constant 8 : i32
    %61 = arith.muli %c1_i32_19, %c8_i32_20 : i32
    %62 = arith.addi %61, %2 : i32
    %c0_i32_21 = arith.constant 0 : i32
    %63 = arith.addi %62, %c0_i32_21 : i32
    %64 = arith.index_cast %63 : i32 to index
    %65 = memref.load %arg1[%64] : memref<64xi32, #tpu.memory_space<smem>>
    %66 = arith.index_cast %65 : i32 to index
    %c0_22 = arith.constant 0 : index
    %67 = vector.load %arg2[%66, %c0_22] : memref<32x128xf32, #tpu.memory_space<vmem>>, vector<1x128xf32>
    %68 = arith.addf %18, %67 : vector<1x128xf32>
    %c1_i32_23 = arith.constant 1 : i32
    %69 = arith.addi %62, %c1_i32_23 : i32
    %70 = arith.index_cast %69 : i32 to index
    %71 = memref.load %arg1[%70] : memref<64xi32, #tpu.memory_space<smem>>
    %72 = arith.index_cast %71 : i32 to index
    %c0_24 = arith.constant 0 : index
    %73 = vector.load %arg2[%72, %c0_24] : memref<32x128xf32, #tpu.memory_space<vmem>>, vector<1x128xf32>
    %74 = arith.addf %24, %73 : vector<1x128xf32>
    %c2_i32_25 = arith.constant 2 : i32
    %75 = arith.addi %62, %c2_i32_25 : i32
    %76 = arith.index_cast %75 : i32 to index
    %77 = memref.load %arg1[%76] : memref<64xi32, #tpu.memory_space<smem>>
    %78 = arith.index_cast %77 : i32 to index
    %c0_26 = arith.constant 0 : index
    %79 = vector.load %arg2[%78, %c0_26] : memref<32x128xf32, #tpu.memory_space<vmem>>, vector<1x128xf32>
    %80 = arith.addf %30, %79 : vector<1x128xf32>
    %c3_i32_27 = arith.constant 3 : i32
    %81 = arith.addi %62, %c3_i32_27 : i32
    %82 = arith.index_cast %81 : i32 to index
    %83 = memref.load %arg1[%82] : memref<64xi32, #tpu.memory_space<smem>>
    %84 = arith.index_cast %83 : i32 to index
    %c0_28 = arith.constant 0 : index
    %85 = vector.load %arg2[%84, %c0_28] : memref<32x128xf32, #tpu.memory_space<vmem>>, vector<1x128xf32>
    %86 = arith.addf %36, %85 : vector<1x128xf32>
    %c4_i32_29 = arith.constant 4 : i32
    %87 = arith.addi %62, %c4_i32_29 : i32
    %88 = arith.index_cast %87 : i32 to index
    %89 = memref.load %arg1[%88] : memref<64xi32, #tpu.memory_space<smem>>
    %90 = arith.index_cast %89 : i32 to index
    %c0_30 = arith.constant 0 : index
    %91 = vector.load %arg2[%90, %c0_30] : memref<32x128xf32, #tpu.memory_space<vmem>>, vector<1x128xf32>
    %92 = arith.addf %42, %91 : vector<1x128xf32>
    %c5_i32_31 = arith.constant 5 : i32
    %93 = arith.addi %62, %c5_i32_31 : i32
    %94 = arith.index_cast %93 : i32 to index
    %95 = memref.load %arg1[%94] : memref<64xi32, #tpu.memory_space<smem>>
    %96 = arith.index_cast %95 : i32 to index
    %c0_32 = arith.constant 0 : index
    %97 = vector.load %arg2[%96, %c0_32] : memref<32x128xf32, #tpu.memory_space<vmem>>, vector<1x128xf32>
    %98 = arith.addf %48, %97 : vector<1x128xf32>
    %c6_i32_33 = arith.constant 6 : i32
    %99 = arith.addi %62, %c6_i32_33 : i32
    %100 = arith.index_cast %99 : i32 to index
    %101 = memref.load %arg1[%100] : memref<64xi32, #tpu.memory_space<smem>>
    %102 = arith.index_cast %101 : i32 to index
    %c0_34 = arith.constant 0 : index
    %103 = vector.load %arg2[%102, %c0_34] : memref<32x128xf32, #tpu.memory_space<vmem>>, vector<1x128xf32>
    %104 = arith.addf %54, %103 : vector<1x128xf32>
    %c7_i32_35 = arith.constant 7 : i32
    %105 = arith.addi %62, %c7_i32_35 : i32
    %106 = arith.index_cast %105 : i32 to index
    %107 = memref.load %arg1[%106] : memref<64xi32, #tpu.memory_space<smem>>
    %108 = arith.index_cast %107 : i32 to index
    %c0_36 = arith.constant 0 : index
    %109 = vector.load %arg2[%108, %c0_36] : memref<32x128xf32, #tpu.memory_space<vmem>>, vector<1x128xf32>
    %110 = arith.addf %60, %109 : vector<1x128xf32>
    %c2_i32_37 = arith.constant 2 : i32
    %c8_i32_38 = arith.constant 8 : i32
    %111 = arith.muli %c2_i32_37, %c8_i32_38 : i32
    %112 = arith.addi %111, %2 : i32
    %c0_i32_39 = arith.constant 0 : i32
    %113 = arith.addi %112, %c0_i32_39 : i32
    %114 = arith.index_cast %113 : i32 to index
    %115 = memref.load %arg1[%114] : memref<64xi32, #tpu.memory_space<smem>>
    %116 = arith.index_cast %115 : i32 to index
    %c0_40 = arith.constant 0 : index
    %117 = vector.load %arg2[%116, %c0_40] : memref<32x128xf32, #tpu.memory_space<vmem>>, vector<1x128xf32>
    %118 = arith.addf %68, %117 : vector<1x128xf32>
    %c1_i32_41 = arith.constant 1 : i32
    %119 = arith.addi %112, %c1_i32_41 : i32
    %120 = arith.index_cast %119 : i32 to index
    %121 = memref.load %arg1[%120] : memref<64xi32, #tpu.memory_space<smem>>
    %122 = arith.index_cast %121 : i32 to index
    %c0_42 = arith.constant 0 : index
    %123 = vector.load %arg2[%122, %c0_42] : memref<32x128xf32, #tpu.memory_space<vmem>>, vector<1x128xf32>
    %124 = arith.addf %74, %123 : vector<1x128xf32>
    %c2_i32_43 = arith.constant 2 : i32
    %125 = arith.addi %112, %c2_i32_43 : i32
    %126 = arith.index_cast %125 : i32 to index
    %127 = memref.load %arg1[%126] : memref<64xi32, #tpu.memory_space<smem>>
    %128 = arith.index_cast %127 : i32 to index
    %c0_44 = arith.constant 0 : index
    %129 = vector.load %arg2[%128, %c0_44] : memref<32x128xf32, #tpu.memory_space<vmem>>, vector<1x128xf32>
    %130 = arith.addf %80, %129 : vector<1x128xf32>
    %c3_i32_45 = arith.constant 3 : i32
    %131 = arith.addi %112, %c3_i32_45 : i32
    %132 = arith.index_cast %131 : i32 to index
    %133 = memref.load %arg1[%132] : memref<64xi32, #tpu.memory_space<smem>>
    %134 = arith.index_cast %133 : i32 to index
    %c0_46 = arith.constant 0 : index
    %135 = vector.load %arg2[%134, %c0_46] : memref<32x128xf32, #tpu.memory_space<vmem>>, vector<1x128xf32>
    %136 = arith.addf %86, %135 : vector<1x128xf32>
    %c4_i32_47 = arith.constant 4 : i32
    %137 = arith.addi %112, %c4_i32_47 : i32
    %138 = arith.index_cast %137 : i32 to index
    %139 = memref.load %arg1[%138] : memref<64xi32, #tpu.memory_space<smem>>
    %140 = arith.index_cast %139 : i32 to index
    %c0_48 = arith.constant 0 : index
    %141 = vector.load %arg2[%140, %c0_48] : memref<32x128xf32, #tpu.memory_space<vmem>>, vector<1x128xf32>
    %142 = arith.addf %92, %141 : vector<1x128xf32>
    %c5_i32_49 = arith.constant 5 : i32
    %143 = arith.addi %112, %c5_i32_49 : i32
    %144 = arith.index_cast %143 : i32 to index
    %145 = memref.load %arg1[%144] : memref<64xi32, #tpu.memory_space<smem>>
    %146 = arith.index_cast %145 : i32 to index
    %c0_50 = arith.constant 0 : index
    %147 = vector.load %arg2[%146, %c0_50] : memref<32x128xf32, #tpu.memory_space<vmem>>, vector<1x128xf32>
    %148 = arith.addf %98, %147 : vector<1x128xf32>
    %c6_i32_51 = arith.constant 6 : i32
    %149 = arith.addi %112, %c6_i32_51 : i32
    %150 = arith.index_cast %149 : i32 to index
    %151 = memref.load %arg1[%150] : memref<64xi32, #tpu.memory_space<smem>>
    %152 = arith.index_cast %151 : i32 to index
    %c0_52 = arith.constant 0 : index
    %153 = vector.load %arg2[%152, %c0_52] : memref<32x128xf32, #tpu.memory_space<vmem>>, vector<1x128xf32>
    %154 = arith.addf %104, %153 : vector<1x128xf32>
    %c7_i32_53 = arith.constant 7 : i32
    %155 = arith.addi %112, %c7_i32_53 : i32
    %156 = arith.index_cast %155 : i32 to index
    %157 = memref.load %arg1[%156] : memref<64xi32, #tpu.memory_space<smem>>
    %158 = arith.index_cast %157 : i32 to index
    %c0_54 = arith.constant 0 : index
    %159 = vector.load %arg2[%158, %c0_54] : memref<32x128xf32, #tpu.memory_space<vmem>>, vector<1x128xf32>
    %160 = arith.addf %110, %159 : vector<1x128xf32>
    %c3_i32_55 = arith.constant 3 : i32
    %c8_i32_56 = arith.constant 8 : i32
    %161 = arith.muli %c3_i32_55, %c8_i32_56 : i32
    %162 = arith.addi %161, %2 : i32
    %c0_i32_57 = arith.constant 0 : i32
    %163 = arith.addi %162, %c0_i32_57 : i32
    %164 = arith.index_cast %163 : i32 to index
    %165 = memref.load %arg1[%164] : memref<64xi32, #tpu.memory_space<smem>>
    %166 = arith.index_cast %165 : i32 to index
    %c0_58 = arith.constant 0 : index
    %167 = vector.load %arg2[%166, %c0_58] : memref<32x128xf32, #tpu.memory_space<vmem>>, vector<1x128xf32>
    %168 = arith.addf %118, %167 : vector<1x128xf32>
    %c1_i32_59 = arith.constant 1 : i32
    %169 = arith.addi %162, %c1_i32_59 : i32
    %170 = arith.index_cast %169 : i32 to index
    %171 = memref.load %arg1[%170] : memref<64xi32, #tpu.memory_space<smem>>
    %172 = arith.index_cast %171 : i32 to index
    %c0_60 = arith.constant 0 : index
    %173 = vector.load %arg2[%172, %c0_60] : memref<32x128xf32, #tpu.memory_space<vmem>>, vector<1x128xf32>
    %174 = arith.addf %124, %173 : vector<1x128xf32>
    %c2_i32_61 = arith.constant 2 : i32
    %175 = arith.addi %162, %c2_i32_61 : i32
    %176 = arith.index_cast %175 : i32 to index
    %177 = memref.load %arg1[%176] : memref<64xi32, #tpu.memory_space<smem>>
    %178 = arith.index_cast %177 : i32 to index
    %c0_62 = arith.constant 0 : index
    %179 = vector.load %arg2[%178, %c0_62] : memref<32x128xf32, #tpu.memory_space<vmem>>, vector<1x128xf32>
    %180 = arith.addf %130, %179 : vector<1x128xf32>
    %c3_i32_63 = arith.constant 3 : i32
    %181 = arith.addi %162, %c3_i32_63 : i32
    %182 = arith.index_cast %181 : i32 to index
    %183 = memref.load %arg1[%182] : memref<64xi32, #tpu.memory_space<smem>>
    %184 = arith.index_cast %183 : i32 to index
    %c0_64 = arith.constant 0 : index
    %185 = vector.load %arg2[%184, %c0_64] : memref<32x128xf32, #tpu.memory_space<vmem>>, vector<1x128xf32>
    %186 = arith.addf %136, %185 : vector<1x128xf32>
    %c4_i32_65 = arith.constant 4 : i32
    %187 = arith.addi %162, %c4_i32_65 : i32
    %188 = arith.index_cast %187 : i32 to index
    %189 = memref.load %arg1[%188] : memref<64xi32, #tpu.memory_space<smem>>
    %190 = arith.index_cast %189 : i32 to index
    %c0_66 = arith.constant 0 : index
    %191 = vector.load %arg2[%190, %c0_66] : memref<32x128xf32, #tpu.memory_space<vmem>>, vector<1x128xf32>
    %192 = arith.addf %142, %191 : vector<1x128xf32>
    %c5_i32_67 = arith.constant 5 : i32
    %193 = arith.addi %162, %c5_i32_67 : i32
    %194 = arith.index_cast %193 : i32 to index
    %195 = memref.load %arg1[%194] : memref<64xi32, #tpu.memory_space<smem>>
    %196 = arith.index_cast %195 : i32 to index
    %c0_68 = arith.constant 0 : index
    %197 = vector.load %arg2[%196, %c0_68] : memref<32x128xf32, #tpu.memory_space<vmem>>, vector<1x128xf32>
    %198 = arith.addf %148, %197 : vector<1x128xf32>
    %c6_i32_69 = arith.constant 6 : i32
    %199 = arith.addi %162, %c6_i32_69 : i32
    %200 = arith.index_cast %199 : i32 to index
    %201 = memref.load %arg1[%200] : memref<64xi32, #tpu.memory_space<smem>>
    %202 = arith.index_cast %201 : i32 to index
    %c0_70 = arith.constant 0 : index
    %203 = vector.load %arg2[%202, %c0_70] : memref<32x128xf32, #tpu.memory_space<vmem>>, vector<1x128xf32>
    %204 = arith.addf %154, %203 : vector<1x128xf32>
    %c7_i32_71 = arith.constant 7 : i32
    %205 = arith.addi %162, %c7_i32_71 : i32
    %206 = arith.index_cast %205 : i32 to index
    %207 = memref.load %arg1[%206] : memref<64xi32, #tpu.memory_space<smem>>
    %208 = arith.index_cast %207 : i32 to index
    %c0_72 = arith.constant 0 : index
    %209 = vector.load %arg2[%208, %c0_72] : memref<32x128xf32, #tpu.memory_space<vmem>>, vector<1x128xf32>
    %210 = arith.addf %160, %209 : vector<1x128xf32>
    %c4_i32_73 = arith.constant 4 : i32
    %c8_i32_74 = arith.constant 8 : i32
    %211 = arith.muli %c4_i32_73, %c8_i32_74 : i32
    %212 = arith.addi %211, %2 : i32
    %c0_i32_75 = arith.constant 0 : i32
    %213 = arith.addi %212, %c0_i32_75 : i32
    %214 = arith.index_cast %213 : i32 to index
    %215 = memref.load %arg1[%214] : memref<64xi32, #tpu.memory_space<smem>>
    %216 = arith.index_cast %215 : i32 to index
    %c0_76 = arith.constant 0 : index
    %217 = vector.load %arg2[%216, %c0_76] : memref<32x128xf32, #tpu.memory_space<vmem>>, vector<1x128xf32>
    %218 = arith.addf %168, %217 : vector<1x128xf32>
    %c1_i32_77 = arith.constant 1 : i32
    %219 = arith.addi %212, %c1_i32_77 : i32
    %220 = arith.index_cast %219 : i32 to index
    %221 = memref.load %arg1[%220] : memref<64xi32, #tpu.memory_space<smem>>
    %222 = arith.index_cast %221 : i32 to index
    %c0_78 = arith.constant 0 : index
    %223 = vector.load %arg2[%222, %c0_78] : memref<32x128xf32, #tpu.memory_space<vmem>>, vector<1x128xf32>
    %224 = arith.addf %174, %223 : vector<1x128xf32>
    %c2_i32_79 = arith.constant 2 : i32
    %225 = arith.addi %212, %c2_i32_79 : i32
    %226 = arith.index_cast %225 : i32 to index
    %227 = memref.load %arg1[%226] : memref<64xi32, #tpu.memory_space<smem>>
    %228 = arith.index_cast %227 : i32 to index
    %c0_80 = arith.constant 0 : index
    %229 = vector.load %arg2[%228, %c0_80] : memref<32x128xf32, #tpu.memory_space<vmem>>, vector<1x128xf32>
    %230 = arith.addf %180, %229 : vector<1x128xf32>
    %c3_i32_81 = arith.constant 3 : i32
    %231 = arith.addi %212, %c3_i32_81 : i32
    %232 = arith.index_cast %231 : i32 to index
    %233 = memref.load %arg1[%232] : memref<64xi32, #tpu.memory_space<smem>>
    %234 = arith.index_cast %233 : i32 to index
    %c0_82 = arith.constant 0 : index
    %235 = vector.load %arg2[%234, %c0_82] : memref<32x128xf32, #tpu.memory_space<vmem>>, vector<1x128xf32>
    %236 = arith.addf %186, %235 : vector<1x128xf32>
    %c4_i32_83 = arith.constant 4 : i32
    %237 = arith.addi %212, %c4_i32_83 : i32
    %238 = arith.index_cast %237 : i32 to index
    %239 = memref.load %arg1[%238] : memref<64xi32, #tpu.memory_space<smem>>
    %240 = arith.index_cast %239 : i32 to index
    %c0_84 = arith.constant 0 : index
    %241 = vector.load %arg2[%240, %c0_84] : memref<32x128xf32, #tpu.memory_space<vmem>>, vector<1x128xf32>
    %242 = arith.addf %192, %241 : vector<1x128xf32>
    %c5_i32_85 = arith.constant 5 : i32
    %243 = arith.addi %212, %c5_i32_85 : i32
    %244 = arith.index_cast %243 : i32 to index
    %245 = memref.load %arg1[%244] : memref<64xi32, #tpu.memory_space<smem>>
    %246 = arith.index_cast %245 : i32 to index
    %c0_86 = arith.constant 0 : index
    %247 = vector.load %arg2[%246, %c0_86] : memref<32x128xf32, #tpu.memory_space<vmem>>, vector<1x128xf32>
    %248 = arith.addf %198, %247 : vector<1x128xf32>
    %c6_i32_87 = arith.constant 6 : i32
    %249 = arith.addi %212, %c6_i32_87 : i32
    %250 = arith.index_cast %249 : i32 to index
    %251 = memref.load %arg1[%250] : memref<64xi32, #tpu.memory_space<smem>>
    %252 = arith.index_cast %251 : i32 to index
    %c0_88 = arith.constant 0 : index
    %253 = vector.load %arg2[%252, %c0_88] : memref<32x128xf32, #tpu.memory_space<vmem>>, vector<1x128xf32>
    %254 = arith.addf %204, %253 : vector<1x128xf32>
    %c7_i32_89 = arith.constant 7 : i32
    %255 = arith.addi %212, %c7_i32_89 : i32
    %256 = arith.index_cast %255 : i32 to index
    %257 = memref.load %arg1[%256] : memref<64xi32, #tpu.memory_space<smem>>
    %258 = arith.index_cast %257 : i32 to index
    %c0_90 = arith.constant 0 : index
    %259 = vector.load %arg2[%258, %c0_90] : memref<32x128xf32, #tpu.memory_space<vmem>>, vector<1x128xf32>
    %260 = arith.addf %210, %259 : vector<1x128xf32>
    %c5_i32_91 = arith.constant 5 : i32
    %c8_i32_92 = arith.constant 8 : i32
    %261 = arith.muli %c5_i32_91, %c8_i32_92 : i32
    %262 = arith.addi %261, %2 : i32
    %c0_i32_93 = arith.constant 0 : i32
    %263 = arith.addi %262, %c0_i32_93 : i32
    %264 = arith.index_cast %263 : i32 to index
    %265 = memref.load %arg1[%264] : memref<64xi32, #tpu.memory_space<smem>>
    %266 = arith.index_cast %265 : i32 to index
    %c0_94 = arith.constant 0 : index
    %267 = vector.load %arg2[%266, %c0_94] : memref<32x128xf32, #tpu.memory_space<vmem>>, vector<1x128xf32>
    %268 = arith.addf %218, %267 : vector<1x128xf32>
    %c1_i32_95 = arith.constant 1 : i32
    %269 = arith.addi %262, %c1_i32_95 : i32
    %270 = arith.index_cast %269 : i32 to index
    %271 = memref.load %arg1[%270] : memref<64xi32, #tpu.memory_space<smem>>
    %272 = arith.index_cast %271 : i32 to index
    %c0_96 = arith.constant 0 : index
    %273 = vector.load %arg2[%272, %c0_96] : memref<32x128xf32, #tpu.memory_space<vmem>>, vector<1x128xf32>
    %274 = arith.addf %224, %273 : vector<1x128xf32>
    %c2_i32_97 = arith.constant 2 : i32
    %275 = arith.addi %262, %c2_i32_97 : i32
    %276 = arith.index_cast %275 : i32 to index
    %277 = memref.load %arg1[%276] : memref<64xi32, #tpu.memory_space<smem>>
    %278 = arith.index_cast %277 : i32 to index
    %c0_98 = arith.constant 0 : index
    %279 = vector.load %arg2[%278, %c0_98] : memref<32x128xf32, #tpu.memory_space<vmem>>, vector<1x128xf32>
    %280 = arith.addf %230, %279 : vector<1x128xf32>
    %c3_i32_99 = arith.constant 3 : i32
    %281 = arith.addi %262, %c3_i32_99 : i32
    %282 = arith.index_cast %281 : i32 to index
    %283 = memref.load %arg1[%282] : memref<64xi32, #tpu.memory_space<smem>>
    %284 = arith.index_cast %283 : i32 to index
    %c0_100 = arith.constant 0 : index
    %285 = vector.load %arg2[%284, %c0_100] : memref<32x128xf32, #tpu.memory_space<vmem>>, vector<1x128xf32>
    %286 = arith.addf %236, %285 : vector<1x128xf32>
    %c4_i32_101 = arith.constant 4 : i32
    %287 = arith.addi %262, %c4_i32_101 : i32
    %288 = arith.index_cast %287 : i32 to index
    %289 = memref.load %arg1[%288] : memref<64xi32, #tpu.memory_space<smem>>
    %290 = arith.index_cast %289 : i32 to index
    %c0_102 = arith.constant 0 : index
    %291 = vector.load %arg2[%290, %c0_102] : memref<32x128xf32, #tpu.memory_space<vmem>>, vector<1x128xf32>
    %292 = arith.addf %242, %291 : vector<1x128xf32>
    %c5_i32_103 = arith.constant 5 : i32
    %293 = arith.addi %262, %c5_i32_103 : i32
    %294 = arith.index_cast %293 : i32 to index
    %295 = memref.load %arg1[%294] : memref<64xi32, #tpu.memory_space<smem>>
    %296 = arith.index_cast %295 : i32 to index
    %c0_104 = arith.constant 0 : index
    %297 = vector.load %arg2[%296, %c0_104] : memref<32x128xf32, #tpu.memory_space<vmem>>, vector<1x128xf32>
    %298 = arith.addf %248, %297 : vector<1x128xf32>
    %c6_i32_105 = arith.constant 6 : i32
    %299 = arith.addi %262, %c6_i32_105 : i32
    %300 = arith.index_cast %299 : i32 to index
    %301 = memref.load %arg1[%300] : memref<64xi32, #tpu.memory_space<smem>>
    %302 = arith.index_cast %301 : i32 to index
    %c0_106 = arith.constant 0 : index
    %303 = vector.load %arg2[%302, %c0_106] : memref<32x128xf32, #tpu.memory_space<vmem>>, vector<1x128xf32>
    %304 = arith.addf %254, %303 : vector<1x128xf32>
    %c7_i32_107 = arith.constant 7 : i32
    %305 = arith.addi %262, %c7_i32_107 : i32
    %306 = arith.index_cast %305 : i32 to index
    %307 = memref.load %arg1[%306] : memref<64xi32, #tpu.memory_space<smem>>
    %308 = arith.index_cast %307 : i32 to index
    %c0_108 = arith.constant 0 : index
    %309 = vector.load %arg2[%308, %c0_108] : memref<32x128xf32, #tpu.memory_space<vmem>>, vector<1x128xf32>
    %310 = arith.addf %260, %309 : vector<1x128xf32>
    %c6_i32_109 = arith.constant 6 : i32
    %c8_i32_110 = arith.constant 8 : i32
    %311 = arith.muli %c6_i32_109, %c8_i32_110 : i32
    %312 = arith.addi %311, %2 : i32
    %c0_i32_111 = arith.constant 0 : i32
    %313 = arith.addi %312, %c0_i32_111 : i32
    %314 = arith.index_cast %313 : i32 to index
    %315 = memref.load %arg1[%314] : memref<64xi32, #tpu.memory_space<smem>>
    %316 = arith.index_cast %315 : i32 to index
    %c0_112 = arith.constant 0 : index
    %317 = vector.load %arg2[%316, %c0_112] : memref<32x128xf32, #tpu.memory_space<vmem>>, vector<1x128xf32>
    %318 = arith.addf %268, %317 : vector<1x128xf32>
    %c1_i32_113 = arith.constant 1 : i32
    %319 = arith.addi %312, %c1_i32_113 : i32
    %320 = arith.index_cast %319 : i32 to index
    %321 = memref.load %arg1[%320] : memref<64xi32, #tpu.memory_space<smem>>
    %322 = arith.index_cast %321 : i32 to index
    %c0_114 = arith.constant 0 : index
    %323 = vector.load %arg2[%322, %c0_114] : memref<32x128xf32, #tpu.memory_space<vmem>>, vector<1x128xf32>
    %324 = arith.addf %274, %323 : vector<1x128xf32>
    %c2_i32_115 = arith.constant 2 : i32
    %325 = arith.addi %312, %c2_i32_115 : i32
    %326 = arith.index_cast %325 : i32 to index
    %327 = memref.load %arg1[%326] : memref<64xi32, #tpu.memory_space<smem>>
    %328 = arith.index_cast %327 : i32 to index
    %c0_116 = arith.constant 0 : index
    %329 = vector.load %arg2[%328, %c0_116] : memref<32x128xf32, #tpu.memory_space<vmem>>, vector<1x128xf32>
    %330 = arith.addf %280, %329 : vector<1x128xf32>
    %c3_i32_117 = arith.constant 3 : i32
    %331 = arith.addi %312, %c3_i32_117 : i32
    %332 = arith.index_cast %331 : i32 to index
    %333 = memref.load %arg1[%332] : memref<64xi32, #tpu.memory_space<smem>>
    %334 = arith.index_cast %333 : i32 to index
    %c0_118 = arith.constant 0 : index
    %335 = vector.load %arg2[%334, %c0_118] : memref<32x128xf32, #tpu.memory_space<vmem>>, vector<1x128xf32>
    %336 = arith.addf %286, %335 : vector<1x128xf32>
    %c4_i32_119 = arith.constant 4 : i32
    %337 = arith.addi %312, %c4_i32_119 : i32
    %338 = arith.index_cast %337 : i32 to index
    %339 = memref.load %arg1[%338] : memref<64xi32, #tpu.memory_space<smem>>
    %340 = arith.index_cast %339 : i32 to index
    %c0_120 = arith.constant 0 : index
    %341 = vector.load %arg2[%340, %c0_120] : memref<32x128xf32, #tpu.memory_space<vmem>>, vector<1x128xf32>
    %342 = arith.addf %292, %341 : vector<1x128xf32>
    %c5_i32_121 = arith.constant 5 : i32
    %343 = arith.addi %312, %c5_i32_121 : i32
    %344 = arith.index_cast %343 : i32 to index
    %345 = memref.load %arg1[%344] : memref<64xi32, #tpu.memory_space<smem>>
    %346 = arith.index_cast %345 : i32 to index
    %c0_122 = arith.constant 0 : index
    %347 = vector.load %arg2[%346, %c0_122] : memref<32x128xf32, #tpu.memory_space<vmem>>, vector<1x128xf32>
    %348 = arith.addf %298, %347 : vector<1x128xf32>
    %c6_i32_123 = arith.constant 6 : i32
    %349 = arith.addi %312, %c6_i32_123 : i32
    %350 = arith.index_cast %349 : i32 to index
    %351 = memref.load %arg1[%350] : memref<64xi32, #tpu.memory_space<smem>>
    %352 = arith.index_cast %351 : i32 to index
    %c0_124 = arith.constant 0 : index
    %353 = vector.load %arg2[%352, %c0_124] : memref<32x128xf32, #tpu.memory_space<vmem>>, vector<1x128xf32>
    %354 = arith.addf %304, %353 : vector<1x128xf32>
    %c7_i32_125 = arith.constant 7 : i32
    %355 = arith.addi %312, %c7_i32_125 : i32
    %356 = arith.index_cast %355 : i32 to index
    %357 = memref.load %arg1[%356] : memref<64xi32, #tpu.memory_space<smem>>
    %358 = arith.index_cast %357 : i32 to index
    %c0_126 = arith.constant 0 : index
    %359 = vector.load %arg2[%358, %c0_126] : memref<32x128xf32, #tpu.memory_space<vmem>>, vector<1x128xf32>
    %360 = arith.addf %310, %359 : vector<1x128xf32>
    %c7_i32_127 = arith.constant 7 : i32
    %c8_i32_128 = arith.constant 8 : i32
    %361 = arith.muli %c7_i32_127, %c8_i32_128 : i32
    %362 = arith.addi %361, %2 : i32
    %c0_i32_129 = arith.constant 0 : i32
    %363 = arith.addi %362, %c0_i32_129 : i32
    %364 = arith.index_cast %363 : i32 to index
    %365 = memref.load %arg1[%364] : memref<64xi32, #tpu.memory_space<smem>>
    %366 = arith.index_cast %365 : i32 to index
    %c0_130 = arith.constant 0 : index
    %367 = vector.load %arg2[%366, %c0_130] : memref<32x128xf32, #tpu.memory_space<vmem>>, vector<1x128xf32>
    %368 = arith.addf %318, %367 : vector<1x128xf32>
    %c1_i32_131 = arith.constant 1 : i32
    %369 = arith.addi %362, %c1_i32_131 : i32
    %370 = arith.index_cast %369 : i32 to index
    %371 = memref.load %arg1[%370] : memref<64xi32, #tpu.memory_space<smem>>
    %372 = arith.index_cast %371 : i32 to index
    %c0_132 = arith.constant 0 : index
    %373 = vector.load %arg2[%372, %c0_132] : memref<32x128xf32, #tpu.memory_space<vmem>>, vector<1x128xf32>
    %374 = arith.addf %324, %373 : vector<1x128xf32>
    %c2_i32_133 = arith.constant 2 : i32
    %375 = arith.addi %362, %c2_i32_133 : i32
    %376 = arith.index_cast %375 : i32 to index
    %377 = memref.load %arg1[%376] : memref<64xi32, #tpu.memory_space<smem>>
    %378 = arith.index_cast %377 : i32 to index
    %c0_134 = arith.constant 0 : index
    %379 = vector.load %arg2[%378, %c0_134] : memref<32x128xf32, #tpu.memory_space<vmem>>, vector<1x128xf32>
    %380 = arith.addf %330, %379 : vector<1x128xf32>
    %c3_i32_135 = arith.constant 3 : i32
    %381 = arith.addi %362, %c3_i32_135 : i32
    %382 = arith.index_cast %381 : i32 to index
    %383 = memref.load %arg1[%382] : memref<64xi32, #tpu.memory_space<smem>>
    %384 = arith.index_cast %383 : i32 to index
    %c0_136 = arith.constant 0 : index
    %385 = vector.load %arg2[%384, %c0_136] : memref<32x128xf32, #tpu.memory_space<vmem>>, vector<1x128xf32>
    %386 = arith.addf %336, %385 : vector<1x128xf32>
    %c4_i32_137 = arith.constant 4 : i32
    %387 = arith.addi %362, %c4_i32_137 : i32
    %388 = arith.index_cast %387 : i32 to index
    %389 = memref.load %arg1[%388] : memref<64xi32, #tpu.memory_space<smem>>
    %390 = arith.index_cast %389 : i32 to index
    %c0_138 = arith.constant 0 : index
    %391 = vector.load %arg2[%390, %c0_138] : memref<32x128xf32, #tpu.memory_space<vmem>>, vector<1x128xf32>
    %392 = arith.addf %342, %391 : vector<1x128xf32>
    %c5_i32_139 = arith.constant 5 : i32
    %393 = arith.addi %362, %c5_i32_139 : i32
    %394 = arith.index_cast %393 : i32 to index
    %395 = memref.load %arg1[%394] : memref<64xi32, #tpu.memory_space<smem>>
    %396 = arith.index_cast %395 : i32 to index
    %c0_140 = arith.constant 0 : index
    %397 = vector.load %arg2[%396, %c0_140] : memref<32x128xf32, #tpu.memory_space<vmem>>, vector<1x128xf32>
    %398 = arith.addf %348, %397 : vector<1x128xf32>
    %c6_i32_141 = arith.constant 6 : i32
    %399 = arith.addi %362, %c6_i32_141 : i32
    %400 = arith.index_cast %399 : i32 to index
    %401 = memref.load %arg1[%400] : memref<64xi32, #tpu.memory_space<smem>>
    %402 = arith.index_cast %401 : i32 to index
    %c0_142 = arith.constant 0 : index
    %403 = vector.load %arg2[%402, %c0_142] : memref<32x128xf32, #tpu.memory_space<vmem>>, vector<1x128xf32>
    %404 = arith.addf %354, %403 : vector<1x128xf32>
    %c7_i32_143 = arith.constant 7 : i32
    %405 = arith.addi %362, %c7_i32_143 : i32
    %406 = arith.index_cast %405 : i32 to index
    %407 = memref.load %arg1[%406] : memref<64xi32, #tpu.memory_space<smem>>
    %408 = arith.index_cast %407 : i32 to index
    %c0_144 = arith.constant 0 : index
    %409 = vector.load %arg2[%408, %c0_144] : memref<32x128xf32, #tpu.memory_space<vmem>>, vector<1x128xf32>
    %410 = arith.addf %360, %409 : vector<1x128xf32>
    %c8_i32_145 = arith.constant 8 : i32
    %411 = tpu.concatenate %368, %374, %380, %386, %392, %398, %404, %410 in 0 : vector<1x128xf32>, vector<1x128xf32>, vector<1x128xf32>, vector<1x128xf32>, vector<1x128xf32>, vector<1x128xf32>, vector<1x128xf32>, vector<1x128xf32> -> vector<8x128xf32>
    %cst_146 = arith.constant 1.250000e-01 : f32
    %412 = vector.broadcast %cst_146 : f32 to vector<8x128xf32>
    %413 = arith.mulf %411, %412 : vector<8x128xf32>
    %414 = vector.broadcast %1 : vector<1x128xf32> to vector<8x128xf32>
    %415 = arith.addf %413, %414 : vector<8x128xf32>
    %c0_147 = arith.constant 0 : index
    %c0_148 = arith.constant 0 : index
    %416 = vector.load %arg4[%c0_147, %c0_148] : memref<8x128xf32, #tpu.memory_space<vmem>>, vector<8x128xf32>
    tpu.vector_store %arg4[%c0_147, %c0_148], %415 {strides = array<i32>} : memref<8x128xf32, #tpu.memory_space<vmem>>, vector<8x128xf32>,
    return
  }
  func.func @transform_0(%arg0: i32, %arg1: memref<64xi32, #tpu.memory_space<smem>>) -> (i32, i32) {
    %c0_i32 = arith.constant 0 : i32
    %c0_i32_0 = arith.constant 0 : i32
    %c0_i32_1 = arith.constant 0 : i32
    return %c0_i32, %c0_i32_0 : i32, i32
  }
  func.func @transform_1(%arg0: i32, %arg1: memref<64xi32, #tpu.memory_space<smem>>) -> (i32, i32) {
    %c0_i32 = arith.constant 0 : i32
    %c0_i32_0 = arith.constant 0 : i32
    %c0_i32_1 = arith.constant 0 : i32
    return %c0_i32, %c0_i32_0 : i32, i32
  }
  func.func @transform_2(%arg0: i32, %arg1: memref<64xi32, #tpu.memory_space<smem>>) -> (i32, i32) {
    %c0_i32 = arith.constant 0 : i32
    %c0_i32_0 = arith.constant 0 : i32
    return %arg0, %c0_i32 : i32, i32
  }
}

module attributes {stable_mosaic.version = 11 : i64} {
  func.func @_logreg_kernel(%arg0: i32, %arg1: memref<64xi32, #tpu.memory_space<smem>>, %arg2: memref<32x128xf32, #tpu.memory_space<vmem>>, %arg3: memref<1x128xf32, #tpu.memory_space<vmem>>, %arg4: memref<8x128xf32, #tpu.memory_space<vmem>>) attributes {dimension_semantics = [#tpu.dimension_semantics<parallel>], iteration_bounds = array<i64: 1>, scalar_prefetch = 1 : i64, scratch_operands = 0 : i64, tpu.core_type = #tpu.core_type<tc>, window_params = [{pipeline_mode = #tpu.pipeline_mode<synchronous>, transform_indices = @transform_0, window_bounds = array<i64: 32, 128>}, {pipeline_mode = #tpu.pipeline_mode<synchronous>, transform_indices = @transform_1, window_bounds = array<i64: 1, 128>}, {transform_indices = @transform_2, window_bounds = array<i64: 8, 128>}]} {
    %c8_i32 = arith.constant 8 : i32
    %0 = arith.muli %arg0, %c8_i32 : i32
    %c0 = arith.constant 0 : index
    %c0_0 = arith.constant 0 : index
    %1 = vector.load %arg3[%c0, %c0_0] : memref<1x128xf32, #tpu.memory_space<vmem>>, vector<1x128xf32>
    %c0_i32 = arith.constant 0 : i32
    %2 = arith.addi %0, %c0_i32 : i32
    %cst = arith.constant 0.000000e+00 : f32
    %3 = vector.broadcast %cst : f32 to vector<1x128xf32>
    %cst_1 = arith.constant 0.000000e+00 : f32
    %4 = vector.broadcast %cst_1 : f32 to vector<1x128xf32>
    %cst_2 = arith.constant 0.000000e+00 : f32
    %5 = vector.broadcast %cst_2 : f32 to vector<1x128xf32>
    %cst_3 = arith.constant 0.000000e+00 : f32
    %6 = vector.broadcast %cst_3 : f32 to vector<1x128xf32>
    %cst_4 = arith.constant 0.000000e+00 : f32
    %7 = vector.broadcast %cst_4 : f32 to vector<1x128xf32>
    %cst_5 = arith.constant 0.000000e+00 : f32
    %8 = vector.broadcast %cst_5 : f32 to vector<1x128xf32>
    %cst_6 = arith.constant 0.000000e+00 : f32
    %9 = vector.broadcast %cst_6 : f32 to vector<1x128xf32>
    %cst_7 = arith.constant 0.000000e+00 : f32
    %10 = vector.broadcast %cst_7 : f32 to vector<1x128xf32>
    %c0_i32_8 = arith.constant 0 : i32
    %c8_i32_9 = arith.constant 8 : i32
    %11 = arith.muli %c0_i32_8, %c8_i32_9 : i32
    %12 = arith.addi %11, %2 : i32
    %c0_i32_10 = arith.constant 0 : i32
    %13 = arith.addi %12, %c0_i32_10 : i32
    %14 = arith.index_cast %13 : i32 to index
    %15 = memref.load %arg1[%14] : memref<64xi32, #tpu.memory_space<smem>>
    %16 = arith.index_cast %15 : i32 to index
    %c0_11 = arith.constant 0 : index
    %17 = vector.load %arg2[%16, %c0_11] : memref<32x128xf32, #tpu.memory_space<vmem>>, vector<1x128xf32>
    %18 = arith.addf %3, %17 : vector<1x128xf32>
    %c1_i32 = arith.constant 1 : i32
    %19 = arith.addi %12, %c1_i32 : i32
    %20 = arith.index_cast %19 : i32 to index
    %21 = memref.load %arg1[%20] : memref<64xi32, #tpu.memory_space<smem>>
    %22 = arith.index_cast %21 : i32 to index
    %c0_12 = arith.constant 0 : index
    %23 = vector.load %arg2[%22, %c0_12] : memref<32x128xf32, #tpu.memory_space<vmem>>, vector<1x128xf32>
    %24 = arith.addf %4, %23 : vector<1x128xf32>
    %c2_i32 = arith.constant 2 : i32
    %25 = arith.addi %12, %c2_i32 : i32
    %26 = arith.index_cast %25 : i32 to index
    %27 = memref.load %arg1[%26] : memref<64xi32, #tpu.memory_space<smem>>
    %28 = arith.index_cast %27 : i32 to index
    %c0_13 = arith.constant 0 : index
    %29 = vector.load %arg2[%28, %c0_13] : memref<32x128xf32, #tpu.memory_space<vmem>>, vector<1x128xf32>
    %30 = arith.addf %5, %29 : vector<1x128xf32>
    %c3_i32 = arith.constant 3 : i32
    %31 = arith.addi %12, %c3_i32 : i32
    %32 = arith.index_cast %31 : i32 to index
    %33 = memref.load %arg1[%32] : memref<64xi32, #tpu.memory_space<smem>>
    %34 = arith.index_cast %33 : i32 to index
    %c0_14 = arith.constant 0 : index
    %35 = vector.load %arg2[%34, %c0_14] : memref<32x128xf32, #tpu.memory_space<vmem>>, vector<1x128xf32>
    %36 = arith.addf %6, %35 : vector<1x128xf32>
    %c4_i32 = arith.constant 4 : i32
    %37 = arith.addi %12, %c4_i32 : i32
    %38 = arith.index_cast %37 : i32 to index
    %39 = memref.load %arg1[%38] : memref<64xi32, #tpu.memory_space<smem>>
    %40 = arith.index_cast %39 : i32 to index
    %c0_15 = arith.constant 0 : index
    %41 = vector.load %arg2[%40, %c0_15] : memref<32x128xf32, #tpu.memory_space<vmem>>, vector<1x128xf32>
    %42 = arith.addf %7, %41 : vector<1x128xf32>
    %c5_i32 = arith.constant 5 : i32
    %43 = arith.addi %12, %c5_i32 : i32
    %44 = arith.index_cast %43 : i32 to index
    %45 = memref.load %arg1[%44] : memref<64xi32, #tpu.memory_space<smem>>
    %46 = arith.index_cast %45 : i32 to index
    %c0_16 = arith.constant 0 : index
    %47 = vector.load %arg2[%46, %c0_16] : memref<32x128xf32, #tpu.memory_space<vmem>>, vector<1x128xf32>
    %48 = arith.addf %8, %47 : vector<1x128xf32>
    %c6_i32 = arith.constant 6 : i32
    %49 = arith.addi %12, %c6_i32 : i32
    %50 = arith.index_cast %49 : i32 to index
    %51 = memref.load %arg1[%50] : memref<64xi32, #tpu.memory_space<smem>>
    %52 = arith.index_cast %51 : i32 to index
    %c0_17 = arith.constant 0 : index
    %53 = vector.load %arg2[%52, %c0_17] : memref<32x128xf32, #tpu.memory_space<vmem>>, vector<1x128xf32>
    %54 = arith.addf %9, %53 : vector<1x128xf32>
    %c7_i32 = arith.constant 7 : i32
    %55 = arith.addi %12, %c7_i32 : i32
    %56 = arith.index_cast %55 : i32 to index
    %57 = memref.load %arg1[%56] : memref<64xi32, #tpu.memory_space<smem>>
    %58 = arith.index_cast %57 : i32 to index
    %c0_18 = arith.constant 0 : index
    %59 = vector.load %arg2[%58, %c0_18] : memref<32x128xf32, #tpu.memory_space<vmem>>, vector<1x128xf32>
    %60 = arith.addf %10, %59 : vector<1x128xf32>
    %c1_i32_19 = arith.constant 1 : i32
    %c8_i32_20 = arith.constant 8 : i32
    %61 = arith.muli %c1_i32_19, %c8_i32_20 : i32
    %62 = arith.addi %61, %2 : i32
    %c0_i32_21 = arith.constant 0 : i32
    %63 = arith.addi %62, %c0_i32_21 : i32
    %64 = arith.index_cast %63 : i32 to index
    %65 = memref.load %arg1[%64] : memref<64xi32, #tpu.memory_space<smem>>
    %66 = arith.index_cast %65 : i32 to index
    %c0_22 = arith.constant 0 : index
    %67 = vector.load %arg2[%66, %c0_22] : memref<32x128xf32, #tpu.memory_space<vmem>>, vector<1x128xf32>
    %68 = arith.addf %18, %67 : vector<1x128xf32>
    %c1_i32_23 = arith.constant 1 : i32
    %69 = arith.addi %62, %c1_i32_23 : i32
    %70 = arith.index_cast %69 : i32 to index
    %71 = memref.load %arg1[%70] : memref<64xi32, #tpu.memory_space<smem>>
    %72 = arith.index_cast %71 : i32 to index
    %c0_24 = arith.constant 0 : index
    %73 = vector.load %arg2[%72, %c0_24] : memref<32x128xf32, #tpu.memory_space<vmem>>, vector<1x128xf32>
    %74 = arith.addf %24, %73 : vector<1x128xf32>
    %c2_i32_25 = arith.constant 2 : i32
    %75 = arith.addi %62, %c2_i32_25 : i32
    %76 = arith.index_cast %75 : i32 to index
    %77 = memref.load %arg1[%76] : memref<64xi32, #tpu.memory_space<smem>>
    %78 = arith.index_cast %77 : i32 to index
    %c0_26 = arith.constant 0 : index
    %79 = vector.load %arg2[%78, %c0_26] : memref<32x128xf32, #tpu.memory_space<vmem>>, vector<1x128xf32>
    %80 = arith.addf %30, %79 : vector<1x128xf32>
    %c3_i32_27 = arith.constant 3 : i32
    %81 = arith.addi %62, %c3_i32_27 : i32
    %82 = arith.index_cast %81 : i32 to index
    %83 = memref.load %arg1[%82] : memref<64xi32, #tpu.memory_space<smem>>
    %84 = arith.index_cast %83 : i32 to index
    %c0_28 = arith.constant 0 : index
    %85 = vector.load %arg2[%84, %c0_28] : memref<32x128xf32, #tpu.memory_space<vmem>>, vector<1x128xf32>
    %86 = arith.addf %36, %85 : vector<1x128xf32>
    %c4_i32_29 = arith.constant 4 : i32
    %87 = arith.addi %62, %c4_i32_29 : i32
    %88 = arith.index_cast %87 : i32 to index
    %89 = memref.load %arg1[%88] : memref<64xi32, #tpu.memory_space<smem>>
    %90 = arith.index_cast %89 : i32 to index
    %c0_30 = arith.constant 0 : index
    %91 = vector.load %arg2[%90, %c0_30] : memref<32x128xf32, #tpu.memory_space<vmem>>, vector<1x128xf32>
    %92 = arith.addf %42, %91 : vector<1x128xf32>
    %c5_i32_31 = arith.constant 5 : i32
    %93 = arith.addi %62, %c5_i32_31 : i32
    %94 = arith.index_cast %93 : i32 to index
    %95 = memref.load %arg1[%94] : memref<64xi32, #tpu.memory_space<smem>>
    %96 = arith.index_cast %95 : i32 to index
    %c0_32 = arith.constant 0 : index
    %97 = vector.load %arg2[%96, %c0_32] : memref<32x128xf32, #tpu.memory_space<vmem>>, vector<1x128xf32>
    %98 = arith.addf %48, %97 : vector<1x128xf32>
    %c6_i32_33 = arith.constant 6 : i32
    %99 = arith.addi %62, %c6_i32_33 : i32
    %100 = arith.index_cast %99 : i32 to index
    %101 = memref.load %arg1[%100] : memref<64xi32, #tpu.memory_space<smem>>
    %102 = arith.index_cast %101 : i32 to index
    %c0_34 = arith.constant 0 : index
    %103 = vector.load %arg2[%102, %c0_34] : memref<32x128xf32, #tpu.memory_space<vmem>>, vector<1x128xf32>
    %104 = arith.addf %54, %103 : vector<1x128xf32>
    %c7_i32_35 = arith.constant 7 : i32
    %105 = arith.addi %62, %c7_i32_35 : i32
    %106 = arith.index_cast %105 : i32 to index
    %107 = memref.load %arg1[%106] : memref<64xi32, #tpu.memory_space<smem>>
    %108 = arith.index_cast %107 : i32 to index
    %c0_36 = arith.constant 0 : index
    %109 = vector.load %arg2[%108, %c0_36] : memref<32x128xf32, #tpu.memory_space<vmem>>, vector<1x128xf32>
    %110 = arith.addf %60, %109 : vector<1x128xf32>
    %c2_i32_37 = arith.constant 2 : i32
    %c8_i32_38 = arith.constant 8 : i32
    %111 = arith.muli %c2_i32_37, %c8_i32_38 : i32
    %112 = arith.addi %111, %2 : i32
    %c0_i32_39 = arith.constant 0 : i32
    %113 = arith.addi %112, %c0_i32_39 : i32
    %114 = arith.index_cast %113 : i32 to index
    %115 = memref.load %arg1[%114] : memref<64xi32, #tpu.memory_space<smem>>
    %116 = arith.index_cast %115 : i32 to index
    %c0_40 = arith.constant 0 : index
    %117 = vector.load %arg2[%116, %c0_40] : memref<32x128xf32, #tpu.memory_space<vmem>>, vector<1x128xf32>
    %118 = arith.addf %68, %117 : vector<1x128xf32>
    %c1_i32_41 = arith.constant 1 : i32
    %119 = arith.addi %112, %c1_i32_41 : i32
    %120 = arith.index_cast %119 : i32 to index
    %121 = memref.load %arg1[%120] : memref<64xi32, #tpu.memory_space<smem>>
    %122 = arith.index_cast %121 : i32 to index
    %c0_42 = arith.constant 0 : index
    %123 = vector.load %arg2[%122, %c0_42] : memref<32x128xf32, #tpu.memory_space<vmem>>, vector<1x128xf32>
    %124 = arith.addf %74, %123 : vector<1x128xf32>
    %c2_i32_43 = arith.constant 2 : i32
    %125 = arith.addi %112, %c2_i32_43 : i32
    %126 = arith.index_cast %125 : i32 to index
    %127 = memref.load %arg1[%126] : memref<64xi32, #tpu.memory_space<smem>>
    %128 = arith.index_cast %127 : i32 to index
    %c0_44 = arith.constant 0 : index
    %129 = vector.load %arg2[%128, %c0_44] : memref<32x128xf32, #tpu.memory_space<vmem>>, vector<1x128xf32>
    %130 = arith.addf %80, %129 : vector<1x128xf32>
    %c3_i32_45 = arith.constant 3 : i32
    %131 = arith.addi %112, %c3_i32_45 : i32
    %132 = arith.index_cast %131 : i32 to index
    %133 = memref.load %arg1[%132] : memref<64xi32, #tpu.memory_space<smem>>
    %134 = arith.index_cast %133 : i32 to index
    %c0_46 = arith.constant 0 : index
    %135 = vector.load %arg2[%134, %c0_46] : memref<32x128xf32, #tpu.memory_space<vmem>>, vector<1x128xf32>
    %136 = arith.addf %86, %135 : vector<1x128xf32>
    %c4_i32_47 = arith.constant 4 : i32
    %137 = arith.addi %112, %c4_i32_47 : i32
    %138 = arith.index_cast %137 : i32 to index
    %139 = memref.load %arg1[%138] : memref<64xi32, #tpu.memory_space<smem>>
    %140 = arith.index_cast %139 : i32 to index
    %c0_48 = arith.constant 0 : index
    %141 = vector.load %arg2[%140, %c0_48] : memref<32x128xf32, #tpu.memory_space<vmem>>, vector<1x128xf32>
    %142 = arith.addf %92, %141 : vector<1x128xf32>
    %c5_i32_49 = arith.constant 5 : i32
    %143 = arith.addi %112, %c5_i32_49 : i32
    %144 = arith.index_cast %143 : i32 to index
    %145 = memref.load %arg1[%144] : memref<64xi32, #tpu.memory_space<smem>>
    %146 = arith.index_cast %145 : i32 to index
    %c0_50 = arith.constant 0 : index
    %147 = vector.load %arg2[%146, %c0_50] : memref<32x128xf32, #tpu.memory_space<vmem>>, vector<1x128xf32>
    %148 = arith.addf %98, %147 : vector<1x128xf32>
    %c6_i32_51 = arith.constant 6 : i32
    %149 = arith.addi %112, %c6_i32_51 : i32
    %150 = arith.index_cast %149 : i32 to index
    %151 = memref.load %arg1[%150] : memref<64xi32, #tpu.memory_space<smem>>
    %152 = arith.index_cast %151 : i32 to index
    %c0_52 = arith.constant 0 : index
    %153 = vector.load %arg2[%152, %c0_52] : memref<32x128xf32, #tpu.memory_space<vmem>>, vector<1x128xf32>
    %154 = arith.addf %104, %153 : vector<1x128xf32>
    %c7_i32_53 = arith.constant 7 : i32
    %155 = arith.addi %112, %c7_i32_53 : i32
    %156 = arith.index_cast %155 : i32 to index
    %157 = memref.load %arg1[%156] : memref<64xi32, #tpu.memory_space<smem>>
    %158 = arith.index_cast %157 : i32 to index
    %c0_54 = arith.constant 0 : index
    %159 = vector.load %arg2[%158, %c0_54] : memref<32x128xf32, #tpu.memory_space<vmem>>, vector<1x128xf32>
    %160 = arith.addf %110, %159 : vector<1x128xf32>
    %c3_i32_55 = arith.constant 3 : i32
    %c8_i32_56 = arith.constant 8 : i32
    %161 = arith.muli %c3_i32_55, %c8_i32_56 : i32
    %162 = arith.addi %161, %2 : i32
    %c0_i32_57 = arith.constant 0 : i32
    %163 = arith.addi %162, %c0_i32_57 : i32
    %164 = arith.index_cast %163 : i32 to index
    %165 = memref.load %arg1[%164] : memref<64xi32, #tpu.memory_space<smem>>
    %166 = arith.index_cast %165 : i32 to index
    %c0_58 = arith.constant 0 : index
    %167 = vector.load %arg2[%166, %c0_58] : memref<32x128xf32, #tpu.memory_space<vmem>>, vector<1x128xf32>
    %168 = arith.addf %118, %167 : vector<1x128xf32>
    %c1_i32_59 = arith.constant 1 : i32
    %169 = arith.addi %162, %c1_i32_59 : i32
    %170 = arith.index_cast %169 : i32 to index
    %171 = memref.load %arg1[%170] : memref<64xi32, #tpu.memory_space<smem>>
    %172 = arith.index_cast %171 : i32 to index
    %c0_60 = arith.constant 0 : index
    %173 = vector.load %arg2[%172, %c0_60] : memref<32x128xf32, #tpu.memory_space<vmem>>, vector<1x128xf32>
    %174 = arith.addf %124, %173 : vector<1x128xf32>
    %c2_i32_61 = arith.constant 2 : i32
    %175 = arith.addi %162, %c2_i32_61 : i32
    %176 = arith.index_cast %175 : i32 to index
    %177 = memref.load %arg1[%176] : memref<64xi32, #tpu.memory_space<smem>>
    %178 = arith.index_cast %177 : i32 to index
    %c0_62 = arith.constant 0 : index
    %179 = vector.load %arg2[%178, %c0_62] : memref<32x128xf32, #tpu.memory_space<vmem>>, vector<1x128xf32>
    %180 = arith.addf %130, %179 : vector<1x128xf32>
    %c3_i32_63 = arith.constant 3 : i32
    %181 = arith.addi %162, %c3_i32_63 : i32
    %182 = arith.index_cast %181 : i32 to index
    %183 = memref.load %arg1[%182] : memref<64xi32, #tpu.memory_space<smem>>
    %184 = arith.index_cast %183 : i32 to index
    %c0_64 = arith.constant 0 : index
    %185 = vector.load %arg2[%184, %c0_64] : memref<32x128xf32, #tpu.memory_space<vmem>>, vector<1x128xf32>
    %186 = arith.addf %136, %185 : vector<1x128xf32>
    %c4_i32_65 = arith.constant 4 : i32
    %187 = arith.addi %162, %c4_i32_65 : i32
    %188 = arith.index_cast %187 : i32 to index
    %189 = memref.load %arg1[%188] : memref<64xi32, #tpu.memory_space<smem>>
    %190 = arith.index_cast %189 : i32 to index
    %c0_66 = arith.constant 0 : index
    %191 = vector.load %arg2[%190, %c0_66] : memref<32x128xf32, #tpu.memory_space<vmem>>, vector<1x128xf32>
    %192 = arith.addf %142, %191 : vector<1x128xf32>
    %c5_i32_67 = arith.constant 5 : i32
    %193 = arith.addi %162, %c5_i32_67 : i32
    %194 = arith.index_cast %193 : i32 to index
    %195 = memref.load %arg1[%194] : memref<64xi32, #tpu.memory_space<smem>>
    %196 = arith.index_cast %195 : i32 to index
    %c0_68 = arith.constant 0 : index
    %197 = vector.load %arg2[%196, %c0_68] : memref<32x128xf32, #tpu.memory_space<vmem>>, vector<1x128xf32>
    %198 = arith.addf %148, %197 : vector<1x128xf32>
    %c6_i32_69 = arith.constant 6 : i32
    %199 = arith.addi %162, %c6_i32_69 : i32
    %200 = arith.index_cast %199 : i32 to index
    %201 = memref.load %arg1[%200] : memref<64xi32, #tpu.memory_space<smem>>
    %202 = arith.index_cast %201 : i32 to index
    %c0_70 = arith.constant 0 : index
    %203 = vector.load %arg2[%202, %c0_70] : memref<32x128xf32, #tpu.memory_space<vmem>>, vector<1x128xf32>
    %204 = arith.addf %154, %203 : vector<1x128xf32>
    %c7_i32_71 = arith.constant 7 : i32
    %205 = arith.addi %162, %c7_i32_71 : i32
    %206 = arith.index_cast %205 : i32 to index
    %207 = memref.load %arg1[%206] : memref<64xi32, #tpu.memory_space<smem>>
    %208 = arith.index_cast %207 : i32 to index
    %c0_72 = arith.constant 0 : index
    %209 = vector.load %arg2[%208, %c0_72] : memref<32x128xf32, #tpu.memory_space<vmem>>, vector<1x128xf32>
    %210 = arith.addf %160, %209 : vector<1x128xf32>
    %c4_i32_73 = arith.constant 4 : i32
    %c8_i32_74 = arith.constant 8 : i32
    %211 = arith.muli %c4_i32_73, %c8_i32_74 : i32
    %212 = arith.addi %211, %2 : i32
    %c0_i32_75 = arith.constant 0 : i32
    %213 = arith.addi %212, %c0_i32_75 : i32
    %214 = arith.index_cast %213 : i32 to index
    %215 = memref.load %arg1[%214] : memref<64xi32, #tpu.memory_space<smem>>
    %216 = arith.index_cast %215 : i32 to index
    %c0_76 = arith.constant 0 : index
    %217 = vector.load %arg2[%216, %c0_76] : memref<32x128xf32, #tpu.memory_space<vmem>>, vector<1x128xf32>
    %218 = arith.addf %168, %217 : vector<1x128xf32>
    %c1_i32_77 = arith.constant 1 : i32
    %219 = arith.addi %212, %c1_i32_77 : i32
    %220 = arith.index_cast %219 : i32 to index
    %221 = memref.load %arg1[%220] : memref<64xi32, #tpu.memory_space<smem>>
    %222 = arith.index_cast %221 : i32 to index
    %c0_78 = arith.constant 0 : index
    %223 = vector.load %arg2[%222, %c0_78] : memref<32x128xf32, #tpu.memory_space<vmem>>, vector<1x128xf32>
    %224 = arith.addf %174, %223 : vector<1x128xf32>
    %c2_i32_79 = arith.constant 2 : i32
    %225 = arith.addi %212, %c2_i32_79 : i32
    %226 = arith.index_cast %225 : i32 to index
    %227 = memref.load %arg1[%226] : memref<64xi32, #tpu.memory_space<smem>>
    %228 = arith.index_cast %227 : i32 to index
    %c0_80 = arith.constant 0 : index
    %229 = vector.load %arg2[%228, %c0_80] : memref<32x128xf32, #tpu.memory_space<vmem>>, vector<1x128xf32>
    %230 = arith.addf %180, %229 : vector<1x128xf32>
    %c3_i32_81 = arith.constant 3 : i32
    %231 = arith.addi %212, %c3_i32_81 : i32
    %232 = arith.index_cast %231 : i32 to index
    %233 = memref.load %arg1[%232] : memref<64xi32, #tpu.memory_space<smem>>
    %234 = arith.index_cast %233 : i32 to index
    %c0_82 = arith.constant 0 : index
    %235 = vector.load %arg2[%234, %c0_82] : memref<32x128xf32, #tpu.memory_space<vmem>>, vector<1x128xf32>
    %236 = arith.addf %186, %235 : vector<1x128xf32>
    %c4_i32_83 = arith.constant 4 : i32
    %237 = arith.addi %212, %c4_i32_83 : i32
    %238 = arith.index_cast %237 : i32 to index
    %239 = memref.load %arg1[%238] : memref<64xi32, #tpu.memory_space<smem>>
    %240 = arith.index_cast %239 : i32 to index
    %c0_84 = arith.constant 0 : index
    %241 = vector.load %arg2[%240, %c0_84] : memref<32x128xf32, #tpu.memory_space<vmem>>, vector<1x128xf32>
    %242 = arith.addf %192, %241 : vector<1x128xf32>
    %c5_i32_85 = arith.constant 5 : i32
    %243 = arith.addi %212, %c5_i32_85 : i32
    %244 = arith.index_cast %243 : i32 to index
    %245 = memref.load %arg1[%244] : memref<64xi32, #tpu.memory_space<smem>>
    %246 = arith.index_cast %245 : i32 to index
    %c0_86 = arith.constant 0 : index
    %247 = vector.load %arg2[%246, %c0_86] : memref<32x128xf32, #tpu.memory_space<vmem>>, vector<1x128xf32>
    %248 = arith.addf %198, %247 : vector<1x128xf32>
    %c6_i32_87 = arith.constant 6 : i32
    %249 = arith.addi %212, %c6_i32_87 : i32
    %250 = arith.index_cast %249 : i32 to index
    %251 = memref.load %arg1[%250] : memref<64xi32, #tpu.memory_space<smem>>
    %252 = arith.index_cast %251 : i32 to index
    %c0_88 = arith.constant 0 : index
    %253 = vector.load %arg2[%252, %c0_88] : memref<32x128xf32, #tpu.memory_space<vmem>>, vector<1x128xf32>
    %254 = arith.addf %204, %253 : vector<1x128xf32>
    %c7_i32_89 = arith.constant 7 : i32
    %255 = arith.addi %212, %c7_i32_89 : i32
    %256 = arith.index_cast %255 : i32 to index
    %257 = memref.load %arg1[%256] : memref<64xi32, #tpu.memory_space<smem>>
    %258 = arith.index_cast %257 : i32 to index
    %c0_90 = arith.constant 0 : index
    %259 = vector.load %arg2[%258, %c0_90] : memref<32x128xf32, #tpu.memory_space<vmem>>, vector<1x128xf32>
    %260 = arith.addf %210, %259 : vector<1x128xf32>
    %c5_i32_91 = arith.constant 5 : i32
    %c8_i32_92 = arith.constant 8 : i32
    %261 = arith.muli %c5_i32_91, %c8_i32_92 : i32
    %262 = arith.addi %261, %2 : i32
    %c0_i32_93 = arith.constant 0 : i32
    %263 = arith.addi %262, %c0_i32_93 : i32
    %264 = arith.index_cast %263 : i32 to index
    %265 = memref.load %arg1[%264] : memref<64xi32, #tpu.memory_space<smem>>
    %266 = arith.index_cast %265 : i32 to index
    %c0_94 = arith.constant 0 : index
    %267 = vector.load %arg2[%266, %c0_94] : memref<32x128xf32, #tpu.memory_space<vmem>>, vector<1x128xf32>
    %268 = arith.addf %218, %267 : vector<1x128xf32>
    %c1_i32_95 = arith.constant 1 : i32
    %269 = arith.addi %262, %c1_i32_95 : i32
    %270 = arith.index_cast %269 : i32 to index
    %271 = memref.load %arg1[%270] : memref<64xi32, #tpu.memory_space<smem>>
    %272 = arith.index_cast %271 : i32 to index
    %c0_96 = arith.constant 0 : index
    %273 = vector.load %arg2[%272, %c0_96] : memref<32x128xf32, #tpu.memory_space<vmem>>, vector<1x128xf32>
    %274 = arith.addf %224, %273 : vector<1x128xf32>
    %c2_i32_97 = arith.constant 2 : i32
    %275 = arith.addi %262, %c2_i32_97 : i32
    %276 = arith.index_cast %275 : i32 to index
    %277 = memref.load %arg1[%276] : memref<64xi32, #tpu.memory_space<smem>>
    %278 = arith.index_cast %277 : i32 to index
    %c0_98 = arith.constant 0 : index
    %279 = vector.load %arg2[%278, %c0_98] : memref<32x128xf32, #tpu.memory_space<vmem>>, vector<1x128xf32>
    %280 = arith.addf %230, %279 : vector<1x128xf32>
    %c3_i32_99 = arith.constant 3 : i32
    %281 = arith.addi %262, %c3_i32_99 : i32
    %282 = arith.index_cast %281 : i32 to index
    %283 = memref.load %arg1[%282] : memref<64xi32, #tpu.memory_space<smem>>
    %284 = arith.index_cast %283 : i32 to index
    %c0_100 = arith.constant 0 : index
    %285 = vector.load %arg2[%284, %c0_100] : memref<32x128xf32, #tpu.memory_space<vmem>>, vector<1x128xf32>
    %286 = arith.addf %236, %285 : vector<1x128xf32>
    %c4_i32_101 = arith.constant 4 : i32
    %287 = arith.addi %262, %c4_i32_101 : i32
    %288 = arith.index_cast %287 : i32 to index
    %289 = memref.load %arg1[%288] : memref<64xi32, #tpu.memory_space<smem>>
    %290 = arith.index_cast %289 : i32 to index
    %c0_102 = arith.constant 0 : index
    %291 = vector.load %arg2[%290, %c0_102] : memref<32x128xf32, #tpu.memory_space<vmem>>, vector<1x128xf32>
    %292 = arith.addf %242, %291 : vector<1x128xf32>
    %c5_i32_103 = arith.constant 5 : i32
    %293 = arith.addi %262, %c5_i32_103 : i32
    %294 = arith.index_cast %293 : i32 to index
    %295 = memref.load %arg1[%294] : memref<64xi32, #tpu.memory_space<smem>>
    %296 = arith.index_cast %295 : i32 to index
    %c0_104 = arith.constant 0 : index
    %297 = vector.load %arg2[%296, %c0_104] : memref<32x128xf32, #tpu.memory_space<vmem>>, vector<1x128xf32>
    %298 = arith.addf %248, %297 : vector<1x128xf32>
    %c6_i32_105 = arith.constant 6 : i32
    %299 = arith.addi %262, %c6_i32_105 : i32
    %300 = arith.index_cast %299 : i32 to index
    %301 = memref.load %arg1[%300] : memref<64xi32, #tpu.memory_space<smem>>
    %302 = arith.index_cast %301 : i32 to index
    %c0_106 = arith.constant 0 : index
    %303 = vector.load %arg2[%302, %c0_106] : memref<32x128xf32, #tpu.memory_space<vmem>>, vector<1x128xf32>
    %304 = arith.addf %254, %303 : vector<1x128xf32>
    %c7_i32_107 = arith.constant 7 : i32
    %305 = arith.addi %262, %c7_i32_107 : i32
    %306 = arith.index_cast %305 : i32 to index
    %307 = memref.load %arg1[%306] : memref<64xi32, #tpu.memory_space<smem>>
    %308 = arith.index_cast %307 : i32 to index
    %c0_108 = arith.constant 0 : index
    %309 = vector.load %arg2[%308, %c0_108] : memref<32x128xf32, #tpu.memory_space<vmem>>, vector<1x128xf32>
    %310 = arith.addf %260, %309 : vector<1x128xf32>
    %c6_i32_109 = arith.constant 6 : i32
    %c8_i32_110 = arith.constant 8 : i32
    %311 = arith.muli %c6_i32_109, %c8_i32_110 : i32
    %312 = arith.addi %311, %2 : i32
    %c0_i32_111 = arith.constant 0 : i32
    %313 = arith.addi %312, %c0_i32_111 : i32
    %314 = arith.index_cast %313 : i32 to index
    %315 = memref.load %arg1[%314] : memref<64xi32, #tpu.memory_space<smem>>
    %316 = arith.index_cast %315 : i32 to index
    %c0_112 = arith.constant 0 : index
    %317 = vector.load %arg2[%316, %c0_112] : memref<32x128xf32, #tpu.memory_space<vmem>>, vector<1x128xf32>
    %318 = arith.addf %268, %317 : vector<1x128xf32>
    %c1_i32_113 = arith.constant 1 : i32
    %319 = arith.addi %312, %c1_i32_113 : i32
    %320 = arith.index_cast %319 : i32 to index
    %321 = memref.load %arg1[%320] : memref<64xi32, #tpu.memory_space<smem>>
    %322 = arith.index_cast %321 : i32 to index
    %c0_114 = arith.constant 0 : index
    %323 = vector.load %arg2[%322, %c0_114] : memref<32x128xf32, #tpu.memory_space<vmem>>, vector<1x128xf32>
    %324 = arith.addf %274, %323 : vector<1x128xf32>
    %c2_i32_115 = arith.constant 2 : i32
    %325 = arith.addi %312, %c2_i32_115 : i32
    %326 = arith.index_cast %325 : i32 to index
    %327 = memref.load %arg1[%326] : memref<64xi32, #tpu.memory_space<smem>>
    %328 = arith.index_cast %327 : i32 to index
    %c0_116 = arith.constant 0 : index
    %329 = vector.load %arg2[%328, %c0_116] : memref<32x128xf32, #tpu.memory_space<vmem>>, vector<1x128xf32>
    %330 = arith.addf %280, %329 : vector<1x128xf32>
    %c3_i32_117 = arith.constant 3 : i32
    %331 = arith.addi %312, %c3_i32_117 : i32
    %332 = arith.index_cast %331 : i32 to index
    %333 = memref.load %arg1[%332] : memref<64xi32, #tpu.memory_space<smem>>
    %334 = arith.index_cast %333 : i32 to index
    %c0_118 = arith.constant 0 : index
    %335 = vector.load %arg2[%334, %c0_118] : memref<32x128xf32, #tpu.memory_space<vmem>>, vector<1x128xf32>
    %336 = arith.addf %286, %335 : vector<1x128xf32>
    %c4_i32_119 = arith.constant 4 : i32
    %337 = arith.addi %312, %c4_i32_119 : i32
    %338 = arith.index_cast %337 : i32 to index
    %339 = memref.load %arg1[%338] : memref<64xi32, #tpu.memory_space<smem>>
    %340 = arith.index_cast %339 : i32 to index
    %c0_120 = arith.constant 0 : index
    %341 = vector.load %arg2[%340, %c0_120] : memref<32x128xf32, #tpu.memory_space<vmem>>, vector<1x128xf32>
    %342 = arith.addf %292, %341 : vector<1x128xf32>
    %c5_i32_121 = arith.constant 5 : i32
    %343 = arith.addi %312, %c5_i32_121 : i32
    %344 = arith.index_cast %343 : i32 to index
    %345 = memref.load %arg1[%344] : memref<64xi32, #tpu.memory_space<smem>>
    %346 = arith.index_cast %345 : i32 to index
    %c0_122 = arith.constant 0 : index
    %347 = vector.load %arg2[%346, %c0_122] : memref<32x128xf32, #tpu.memory_space<vmem>>, vector<1x128xf32>
    %348 = arith.addf %298, %347 : vector<1x128xf32>
    %c6_i32_123 = arith.constant 6 : i32
    %349 = arith.addi %312, %c6_i32_123 : i32
    %350 = arith.index_cast %349 : i32 to index
    %351 = memref.load %arg1[%350] : memref<64xi32, #tpu.memory_space<smem>>
    %352 = arith.index_cast %351 : i32 to index
    %c0_124 = arith.constant 0 : index
    %353 = vector.load %arg2[%352, %c0_124] : memref<32x128xf32, #tpu.memory_space<vmem>>, vector<1x128xf32>
    %354 = arith.addf %304, %353 : vector<1x128xf32>
    %c7_i32_125 = arith.constant 7 : i32
    %355 = arith.addi %312, %c7_i32_125 : i32
    %356 = arith.index_cast %355 : i32 to index
    %357 = memref.load %arg1[%356] : memref<64xi32, #tpu.memory_space<smem>>
    %358 = arith.index_cast %357 : i32 to index
    %c0_126 = arith.constant 0 : index
    %359 = vector.load %arg2[%358, %c0_126] : memref<32x128xf32, #tpu.memory_space<vmem>>, vector<1x128xf32>
    %360 = arith.addf %310, %359 : vector<1x128xf32>
    %c7_i32_127 = arith.constant 7 : i32
    %c8_i32_128 = arith.constant 8 : i32
    %361 = arith.muli %c7_i32_127, %c8_i32_128 : i32
    %362 = arith.addi %361, %2 : i32
    %c0_i32_129 = arith.constant 0 : i32
    %363 = arith.addi %362, %c0_i32_129 : i32
    %364 = arith.index_cast %363 : i32 to index
    %365 = memref.load %arg1[%364] : memref<64xi32, #tpu.memory_space<smem>>
    %366 = arith.index_cast %365 : i32 to index
    %c0_130 = arith.constant 0 : index
    %367 = vector.load %arg2[%366, %c0_130] : memref<32x128xf32, #tpu.memory_space<vmem>>, vector<1x128xf32>
    %368 = arith.addf %318, %367 : vector<1x128xf32>
    %c1_i32_131 = arith.constant 1 : i32
    %369 = arith.addi %362, %c1_i32_131 : i32
    %370 = arith.index_cast %369 : i32 to index
    %371 = memref.load %arg1[%370] : memref<64xi32, #tpu.memory_space<smem>>
    %372 = arith.index_cast %371 : i32 to index
    %c0_132 = arith.constant 0 : index
    %373 = vector.load %arg2[%372, %c0_132] : memref<32x128xf32, #tpu.memory_space<vmem>>, vector<1x128xf32>
    %374 = arith.addf %324, %373 : vector<1x128xf32>
    %c2_i32_133 = arith.constant 2 : i32
    %375 = arith.addi %362, %c2_i32_133 : i32
    %376 = arith.index_cast %375 : i32 to index
    %377 = memref.load %arg1[%376] : memref<64xi32, #tpu.memory_space<smem>>
    %378 = arith.index_cast %377 : i32 to index
    %c0_134 = arith.constant 0 : index
    %379 = vector.load %arg2[%378, %c0_134] : memref<32x128xf32, #tpu.memory_space<vmem>>, vector<1x128xf32>
    %380 = arith.addf %330, %379 : vector<1x128xf32>
    %c3_i32_135 = arith.constant 3 : i32
    %381 = arith.addi %362, %c3_i32_135 : i32
    %382 = arith.index_cast %381 : i32 to index
    %383 = memref.load %arg1[%382] : memref<64xi32, #tpu.memory_space<smem>>
    %384 = arith.index_cast %383 : i32 to index
    %c0_136 = arith.constant 0 : index
    %385 = vector.load %arg2[%384, %c0_136] : memref<32x128xf32, #tpu.memory_space<vmem>>, vector<1x128xf32>
    %386 = arith.addf %336, %385 : vector<1x128xf32>
    %c4_i32_137 = arith.constant 4 : i32
    %387 = arith.addi %362, %c4_i32_137 : i32
    %388 = arith.index_cast %387 : i32 to index
    %389 = memref.load %arg1[%388] : memref<64xi32, #tpu.memory_space<smem>>
    %390 = arith.index_cast %389 : i32 to index
    %c0_138 = arith.constant 0 : index
    %391 = vector.load %arg2[%390, %c0_138] : memref<32x128xf32, #tpu.memory_space<vmem>>, vector<1x128xf32>
    %392 = arith.addf %342, %391 : vector<1x128xf32>
    %c5_i32_139 = arith.constant 5 : i32
    %393 = arith.addi %362, %c5_i32_139 : i32
    %394 = arith.index_cast %393 : i32 to index
    %395 = memref.load %arg1[%394] : memref<64xi32, #tpu.memory_space<smem>>
    %396 = arith.index_cast %395 : i32 to index
    %c0_140 = arith.constant 0 : index
    %397 = vector.load %arg2[%396, %c0_140] : memref<32x128xf32, #tpu.memory_space<vmem>>, vector<1x128xf32>
    %398 = arith.addf %348, %397 : vector<1x128xf32>
    %c6_i32_141 = arith.constant 6 : i32
    %399 = arith.addi %362, %c6_i32_141 : i32
    %400 = arith.index_cast %399 : i32 to index
    %401 = memref.load %arg1[%400] : memref<64xi32, #tpu.memory_space<smem>>
    %402 = arith.index_cast %401 : i32 to index
    %c0_142 = arith.constant 0 : index
    %403 = vector.load %arg2[%402, %c0_142] : memref<32x128xf32, #tpu.memory_space<vmem>>, vector<1x128xf32>
    %404 = arith.addf %354, %403 : vector<1x128xf32>
    %c7_i32_143 = arith.constant 7 : i32
    %405 = arith.addi %362, %c7_i32_143 : i32
    %406 = arith.index_cast %405 : i32 to index
    %407 = memref.load %arg1[%406] : memref<64xi32, #tpu.memory_space<smem>>
    %408 = arith.index_cast %407 : i32 to index
    %c0_144 = arith.constant 0 : index
    %409 = vector.load %arg2[%408, %c0_144] : memref<32x128xf32, #tpu.memory_space<vmem>>, vector<1x128xf32>
    %410 = arith.addf %360, %409 : vector<1x128xf32>
    %c8_i32_145 = arith.constant 8 : i32
    %411 = tpu.concatenate %368, %374, %380, %386, %392, %398, %404, %410 in 0 : vector<1x128xf32>, vector<1x128xf32>, vector<1x128xf32>, vector<1x128xf32>, vector<1x128xf32>, vector<1x128xf32>, vector<1x128xf32>, vector<1x128xf32> -> vector<8x128xf32>
    %cst_146 = arith.constant 1.250000e-01 : f32
    %412 = vector.broadcast %cst_146 : f32 to vector<8x128xf32>
    %413 = arith.mulf %411, %412 : vector<8x128xf32>
    %414 = vector.broadcast %1 : vector<1x128xf32> to vector<8x128xf32>
    %415 = arith.addf %413, %414 : vector<8x128xf32>
    %c0_147 = arith.constant 0 : index
    %c0_148 = arith.constant 0 : index
    %416 = vector.load %arg4[%c0_147, %c0_148] : memref<8x128xf32, #tpu.memory_space<vmem>>, vector<8x128xf32>
    tpu.vector_store %arg4[%c0_147, %c0_148], %415 {strides = array<i32>} : memref<8x128xf32, #tpu.memory_space<vmem>>, vector<8x128xf32>,
    return
  }
  func.func @transform_0(%arg0: i32, %arg1: memref<64xi32, #tpu.memory_space<smem>>) -> (i32, i32) {
    %c0_i32 = arith.constant 0 : i32
    %c0_i32_0 = arith.constant 0 : i32
    %c0_i32_1 = arith.constant 0 : i32
    return %c0_i32, %c0_i32_0 : i32, i32
  }
  func.func @transform_1(%arg0: i32, %arg1: memref<64xi32, #tpu.memory_space<smem>>) -> (i32, i32) {
    %c0_i32 = arith.constant 0 : i32
    %c0_i32_0 = arith.constant 0 : i32
    %c0_i32_1 = arith.constant 0 : i32
    return %c0_i32, %c0_i32_0 : i32, i32
  }
  func.func @transform_2(%arg0: i32, %arg1: memref<64xi32, #tpu.memory_space<smem>>) -> (i32, i32) {
    %c0_i32 = arith.constant 0 : i32
    %c0_i32_0 = arith.constant 0 : i32
    return %arg0, %c0_i32 : i32, i32
  }
}

</mosaic_0001>

<llo_original>
// kernel: tpu_custom_call.1
$region0: #{tpu_custom_call.1}
  #allocation0 [shape = 'u32[]', space=smem, size = 0x4, offset = 0x4, fixed_abs, tag = 'smem constant byte address 0x4 - core index']
  #allocation1 [shape = 'u32[144,128]{1,0:T(1,128)}', space=vmem, size = 0x12000, scoped, tag = 'internal scratch']
  #allocation2 [shape = 's32[1]{0}', space=sflag, size = 0x4, scoped, tag = 'scoped memory for tpu_custom_call.1']
  #allocation3 [shape = 'u8[512]{0}', space=smem, size = 0x200, scoped, tag = 'prefetched SMEM operand 0']
  %s0 = inlined_call_operand.hbm [shape: s32[64], index: 0, kind: input, shape index: {}]
  %s1 = inlined_call_operand.hbm [shape: f32[32,128], index: 1, kind: input, shape index: {}]
  %s2 = inlined_call_operand.vmem [shape: f32[1,128], index: 2, kind: input, shape index: {}]
  %s3 = inlined_call_operand.hbm [shape: f32[8,128], index: 3, kind: output, shape index: {}]
  %s4 = sld [smem:[#allocation0]]
  $region22: #{tpu_custom_call.1} parent=0
    _
  %s6 = ssub.s32 1, %s4
  %s7 = scalar_select 0, %s6, %s4
  %9 = dma.hbm_to_smem %s0, 16, [#allocation3], [#allocation2]
  %10 = dma.done [#allocation2], 16
  %11 = sfence
  $region1: #{tpu_custom_call.1} parent=0
    #allocation4 [shape = 'u8[16384]{0}', space=vmem, size = 0x4000, scoped, tag = 'input window, operand 1, single buffered']
    #allocation5 [shape = 's32[1]{0}', space=sflag, size = 0x4, scoped, tag = 'scoped memory for tpu_custom_call.1']
    #allocation6 [shape = 's32[1]{0}', space=sflag, size = 0x4, scoped, tag = 'scoped memory for tpu_custom_call.1']
    #allocation7 [shape = 'u8[4096]{0}', space=vmem, size = 0x1000, scoped, tag = 'output window, operand 0, single buffered']
    %12 = vsyncpa [#allocation5], 0
    %13 = vsyncpa [#allocation6], 0
    // Predicated region
    $region2: #{tpu_custom_call.1} parent=1 // pred_check
      _
    $region3: #{tpu_custom_call.1} parent=1 // pred_check_branch
      %15 = sbr.rel (0) target = $region5
    $region4: #{tpu_custom_call.1} parent=1 // pred_region
      %s17 = ssub.s32 512, 512
      %18 = vsyncadd [#allocation5], %s17
      %s19 = sshll.u32 [#allocation4], 4
      %s20 = int_to_ptr.vmem [resolvable:$true] %s19
      %25 = dma.hbm_to_vmem [thread:$0]  %s1, 512, %s20, [#allocation5], 128, 128, 8
    $region5: #{tpu_custom_call.1} parent=1 // pred_fallthru
      _
    // Predicated region
    $region6: #{tpu_custom_call.1} parent=1 // pred_check
      _
    $region7: #{tpu_custom_call.1} parent=1 // pred_check_branch
      %27 = sbr.rel (0) target = $region9
    $region8: #{tpu_custom_call.1} parent=1 // pred_region
      _
    $region9: #{tpu_custom_call.1} parent=1 // pred_fallthru
      _
    // Predicated region
    $region10: #{tpu_custom_call.1} parent=1 // pred_check
      _
    $region11: #{tpu_custom_call.1} parent=1 // pred_check_branch
      %29 = sbr.rel (0) target = $region13
    $region12: #{tpu_custom_call.1} parent=1 // pred_region
      %30 = dma.done [#allocation5], 512
    $region13: #{tpu_custom_call.1} parent=1 // pred_fallthru
      _
    %s31 = smul.u32 0, 8
    %v32 = vld [vmem:[%s2] sm:$0x1]
    %s33 = sld [smem:[#allocation3 + %s31]]
    %s34 = scalar_lea.vmem [#allocation4], %s33
    %v35 = vld [vmem:[%s34] sm:$0x1]
    %v36 = vadd.f32 %v35, 0.0
    %s37 = sadd.s32 %s31, 1
    %s38 = sld [smem:[#allocation3 + %s37]]
    %s39 = scalar_lea.vmem [#allocation4], %s38
    %v40 = vld [vmem:[%s39] sm:$0x1]
    %v41 = vadd.f32 %v40, 0.0
    %s42 = sadd.s32 %s31, 2
    %s43 = sld [smem:[#allocation3 + %s42]]
    %s44 = scalar_lea.vmem [#allocation4], %s43
    %v45 = vld [vmem:[%s44] sm:$0x1]
    %v46 = vadd.f32 %v45, 0.0
    %s47 = sadd.s32 %s31, 3
    %s48 = sld [smem:[#allocation3 + %s47]]
    %s49 = scalar_lea.vmem [#allocation4], %s48
    %v50 = vld [vmem:[%s49] sm:$0x1]
    %v51 = vadd.f32 %v50, 0.0
    %s52 = sadd.s32 %s31, 4
    %s53 = sld [smem:[#allocation3 + %s52]]
    %s54 = scalar_lea.vmem [#allocation4], %s53
    %v55 = vld [vmem:[%s54] sm:$0x1]
    %v56 = vadd.f32 %v55, 0.0
    %s57 = sadd.s32 %s31, 5
    %s58 = sld [smem:[#allocation3 + %s57]]
    %s59 = scalar_lea.vmem [#allocation4], %s58
    %v60 = vld [vmem:[%s59] sm:$0x1]
    %v61 = vadd.f32 %v60, 0.0
    %s62 = sadd.s32 %s31, 6
    %s63 = sld [smem:[#allocation3 + %s62]]
    %s64 = scalar_lea.vmem [#allocation4], %s63
    %v65 = vld [vmem:[%s64] sm:$0x1]
    %v66 = vadd.f32 %v65, 0.0
    %s67 = sadd.s32 %s31, 7
    %s68 = sld [smem:[#allocation3 + %s67]]
    %s69 = scalar_lea.vmem [#allocation4], %s68
    %v70 = vld [vmem:[%s69] sm:$0x1]
    %v71 = vadd.f32 %v70, 0.0
    %s72 = sadd.s32 %s31, 8
    %s73 = sld [smem:[#allocation3 + %s72]]
    %s74 = scalar_lea.vmem [#allocation4], %s73
    %v75 = vld [vmem:[%s74] sm:$0x1]
    %v76 = vadd.f32 %v36, %v75
    %s77 = sadd.s32 %s31, 9
    %s78 = sld [smem:[#allocation3 + %s77]]
    %s79 = scalar_lea.vmem [#allocation4], %s78
    %v80 = vld [vmem:[%s79] sm:$0x1]
    %v81 = vadd.f32 %v41, %v80
    %s82 = sadd.s32 %s31, 10
    %s83 = sld [smem:[#allocation3 + %s82]]
    %s84 = scalar_lea.vmem [#allocation4], %s83
    %v85 = vld [vmem:[%s84] sm:$0x1]
    %v86 = vadd.f32 %v46, %v85
    %s87 = sadd.s32 %s31, 11
    %s88 = sld [smem:[#allocation3 + %s87]]
    %s89 = scalar_lea.vmem [#allocation4], %s88
    %v90 = vld [vmem:[%s89] sm:$0x1]
    %v91 = vadd.f32 %v51, %v90
    %s92 = sadd.s32 %s31, 12
    %s93 = sld [smem:[#allocation3 + %s92]]
    %s94 = scalar_lea.vmem [#allocation4], %s93
    %v95 = vld [vmem:[%s94] sm:$0x1]
    %v96 = vadd.f32 %v56, %v95
    %s97 = sadd.s32 %s31, 13
    %s98 = sld [smem:[#allocation3 + %s97]]
    %s99 = scalar_lea.vmem [#allocation4], %s98
    %v100 = vld [vmem:[%s99] sm:$0x1]
    %v101 = vadd.f32 %v61, %v100
    %s102 = sadd.s32 %s31, 14
    %s103 = sld [smem:[#allocation3 + %s102]]
    %s104 = scalar_lea.vmem [#allocation4], %s103
    %v105 = vld [vmem:[%s104] sm:$0x1]
    %v106 = vadd.f32 %v66, %v105
    %s107 = sadd.s32 %s31, 15
    %s108 = sld [smem:[#allocation3 + %s107]]
    %s109 = scalar_lea.vmem [#allocation4], %s108
    %v110 = vld [vmem:[%s109] sm:$0x1]
    %v111 = vadd.f32 %v71, %v110
    %s112 = sadd.s32 %s31, 16
    %s113 = sld [smem:[#allocation3 + %s112]]
    %s114 = scalar_lea.vmem [#allocation4], %s113
    %v115 = vld [vmem:[%s114] sm:$0x1]
    %v116 = vadd.f32 %v76, %v115
    %s117 = sadd.s32 %s31, 17
    %s118 = sld [smem:[#allocation3 + %s117]]
    %s119 = scalar_lea.vmem [#allocation4], %s118
    %v120 = vld [vmem:[%s119] sm:$0x1]
    %v121 = vadd.f32 %v81, %v120
    %s122 = sadd.s32 %s31, 18
    %s123 = sld [smem:[#allocation3 + %s122]]
    %s124 = scalar_lea.vmem [#allocation4], %s123
    %v125 = vld [vmem:[%s124] sm:$0x1]
    %v126 = vadd.f32 %v86, %v125
    %s127 = sadd.s32 %s31, 19
    %s128 = sld [smem:[#allocation3 + %s127]]
    %s129 = scalar_lea.vmem [#allocation4], %s128
    %v130 = vld [vmem:[%s129] sm:$0x1]
    %v131 = vadd.f32 %v91, %v130
    %s132 = sadd.s32 %s31, 20
    %s133 = sld [smem:[#allocation3 + %s132]]
    %s134 = scalar_lea.vmem [#allocation4], %s133
    %v135 = vld [vmem:[%s134] sm:$0x1]
    %v136 = vadd.f32 %v96, %v135
    %s137 = sadd.s32 %s31, 21
    %s138 = sld [smem:[#allocation3 + %s137]]
    %s139 = scalar_lea.vmem [#allocation4], %s138
    %v140 = vld [vmem:[%s139] sm:$0x1]
    %v141 = vadd.f32 %v101, %v140
    %s142 = sadd.s32 %s31, 22
    %s143 = sld [smem:[#allocation3 + %s142]]
    %s144 = scalar_lea.vmem [#allocation4], %s143
    %v145 = vld [vmem:[%s144] sm:$0x1]
    %v146 = vadd.f32 %v106, %v145
    %s147 = sadd.s32 %s31, 23
    %s148 = sld [smem:[#allocation3 + %s147]]
    %s149 = scalar_lea.vmem [#allocation4], %s148
    %v150 = vld [vmem:[%s149] sm:$0x1]
    %v151 = vadd.f32 %v111, %v150
    %s152 = sadd.s32 %s31, 24
    %s153 = sld [smem:[#allocation3 + %s152]]
    %s154 = scalar_lea.vmem [#allocation4], %s153
    %v155 = vld [vmem:[%s154] sm:$0x1]
    %v156 = vadd.f32 %v116, %v155
    %s157 = sadd.s32 %s31, 25
    %s158 = sld [smem:[#allocation3 + %s157]]
    %s159 = scalar_lea.vmem [#allocation4], %s158
    %v160 = vld [vmem:[%s159] sm:$0x1]
    %v161 = vadd.f32 %v121, %v160
    %s162 = sadd.s32 %s31, 26
    %s163 = sld [smem:[#allocation3 + %s162]]
    %s164 = scalar_lea.vmem [#allocation4], %s163
    %v165 = vld [vmem:[%s164] sm:$0x1]
    %v166 = vadd.f32 %v126, %v165
    %s167 = sadd.s32 %s31, 27
    %s168 = sld [smem:[#allocation3 + %s167]]
    %s169 = scalar_lea.vmem [#allocation4], %s168
    %v170 = vld [vmem:[%s169] sm:$0x1]
    %v171 = vadd.f32 %v131, %v170
    %s172 = sadd.s32 %s31, 28
    %s173 = sld [smem:[#allocation3 + %s172]]
    %s174 = scalar_lea.vmem [#allocation4], %s173
    %v175 = vld [vmem:[%s174] sm:$0x1]
    %v176 = vadd.f32 %v136, %v175
    %s177 = sadd.s32 %s31, 29
    %s178 = sld [smem:[#allocation3 + %s177]]
    %s179 = scalar_lea.vmem [#allocation4], %s178
    %v180 = vld [vmem:[%s179] sm:$0x1]
    %v181 = vadd.f32 %v141, %v180
    %s182 = sadd.s32 %s31, 30
    %s183 = sld [smem:[#allocation3 + %s182]]
    %s184 = scalar_lea.vmem [#allocation4], %s183
    %v185 = vld [vmem:[%s184] sm:$0x1]
    %v186 = vadd.f32 %v146, %v185
    %s187 = sadd.s32 %s31, 31
    %s188 = sld [smem:[#allocation3 + %s187]]
    %s189 = scalar_lea.vmem [#allocation4], %s188
    %v190 = vld [vmem:[%s189] sm:$0x1]
    %v191 = vadd.f32 %v151, %v190
    %s192 = sadd.s32 %s31, 32
    %s193 = sld [smem:[#allocation3 + %s192]]
    %s194 = scalar_lea.vmem [#allocation4], %s193
    %v195 = vld [vmem:[%s194] sm:$0x1]
    %v196 = vadd.f32 %v156, %v195
    %s197 = sadd.s32 %s31, 33
    %s198 = sld [smem:[#allocation3 + %s197]]
    %s199 = scalar_lea.vmem [#allocation4], %s198
    %v200 = vld [vmem:[%s199] sm:$0x1]
    %v201 = vadd.f32 %v161, %v200
    %s202 = sadd.s32 %s31, 34
    %s203 = sld [smem:[#allocation3 + %s202]]
    %s204 = scalar_lea.vmem [#allocation4], %s203
    %v205 = vld [vmem:[%s204] sm:$0x1]
    %v206 = vadd.f32 %v166, %v205
    %s207 = sadd.s32 %s31, 35
    %s208 = sld [smem:[#allocation3 + %s207]]
    %s209 = scalar_lea.vmem [#allocation4], %s208
    %v210 = vld [vmem:[%s209] sm:$0x1]
    %v211 = vadd.f32 %v171, %v210
    %s212 = sadd.s32 %s31, 36
    %s213 = sld [smem:[#allocation3 + %s212]]
    %s214 = scalar_lea.vmem [#allocation4], %s213
    %v215 = vld [vmem:[%s214] sm:$0x1]
    %v216 = vadd.f32 %v176, %v215
    %s217 = sadd.s32 %s31, 37
    %s218 = sld [smem:[#allocation3 + %s217]]
    %s219 = scalar_lea.vmem [#allocation4], %s218
    %v220 = vld [vmem:[%s219] sm:$0x1]
    %v221 = vadd.f32 %v181, %v220
    %s222 = sadd.s32 %s31, 38
    %s223 = sld [smem:[#allocation3 + %s222]]
    %s224 = scalar_lea.vmem [#allocation4], %s223
    %v225 = vld [vmem:[%s224] sm:$0x1]
    %v226 = vadd.f32 %v186, %v225
    %s227 = sadd.s32 %s31, 39
    %s228 = sld [smem:[#allocation3 + %s227]]
    %s229 = scalar_lea.vmem [#allocation4], %s228
    %v230 = vld [vmem:[%s229] sm:$0x1]
    %v231 = vadd.f32 %v191, %v230
    %s232 = sadd.s32 %s31, 40
    %s233 = sld [smem:[#allocation3 + %s232]]
    %s234 = scalar_lea.vmem [#allocation4], %s233
    %v235 = vld [vmem:[%s234] sm:$0x1]
    %v236 = vadd.f32 %v196, %v235
    %s237 = sadd.s32 %s31, 41
    %s238 = sld [smem:[#allocation3 + %s237]]
    %s239 = scalar_lea.vmem [#allocation4], %s238
    %v240 = vld [vmem:[%s239] sm:$0x1]
    %v241 = vadd.f32 %v201, %v240
    %s242 = sadd.s32 %s31, 42
    %s243 = sld [smem:[#allocation3 + %s242]]
    %s244 = scalar_lea.vmem [#allocation4], %s243
    %v245 = vld [vmem:[%s244] sm:$0x1]
    %v246 = vadd.f32 %v206, %v245
    %s247 = sadd.s32 %s31, 43
    %s248 = sld [smem:[#allocation3 + %s247]]
    %s249 = scalar_lea.vmem [#allocation4], %s248
    %v250 = vld [vmem:[%s249] sm:$0x1]
    %v251 = vadd.f32 %v211, %v250
    %s252 = sadd.s32 %s31, 44
    %s253 = sld [smem:[#allocation3 + %s252]]
    %s254 = scalar_lea.vmem [#allocation4], %s253
    %v255 = vld [vmem:[%s254] sm:$0x1]
    %v256 = vadd.f32 %v216, %v255
    %s257 = sadd.s32 %s31, 45
    %s258 = sld [smem:[#allocation3 + %s257]]
    %s259 = scalar_lea.vmem [#allocation4], %s258
    %v260 = vld [vmem:[%s259] sm:$0x1]
    %v261 = vadd.f32 %v221, %v260
    %s262 = sadd.s32 %s31, 46
    %s263 = sld [smem:[#allocation3 + %s262]]
    %s264 = scalar_lea.vmem [#allocation4], %s263
    %v265 = vld [vmem:[%s264] sm:$0x1]
    %v266 = vadd.f32 %v226, %v265
    %s267 = sadd.s32 %s31, 47
    %s268 = sld [smem:[#allocation3 + %s267]]
    %s269 = scalar_lea.vmem [#allocation4], %s268
    %v270 = vld [vmem:[%s269] sm:$0x1]
    %v271 = vadd.f32 %v231, %v270
    %s272 = sadd.s32 %s31, 48
    %s273 = sld [smem:[#allocation3 + %s272]]
    %s274 = scalar_lea.vmem [#allocation4], %s273
    %v275 = vld [vmem:[%s274] sm:$0x1]
    %v276 = vadd.f32 %v236, %v275
    %s277 = sadd.s32 %s31, 49
    %s278 = sld [smem:[#allocation3 + %s277]]
    %s279 = scalar_lea.vmem [#allocation4], %s278
    %v280 = vld [vmem:[%s279] sm:$0x1]
    %v281 = vadd.f32 %v241, %v280
    %s282 = sadd.s32 %s31, 50
    %s283 = sld [smem:[#allocation3 + %s282]]
    %s284 = scalar_lea.vmem [#allocation4], %s283
    %v285 = vld [vmem:[%s284] sm:$0x1]
    %v286 = vadd.f32 %v246, %v285
    %s287 = sadd.s32 %s31, 51
    %s288 = sld [smem:[#allocation3 + %s287]]
    %s289 = scalar_lea.vmem [#allocation4], %s288
    %v290 = vld [vmem:[%s289] sm:$0x1]
    %v291 = vadd.f32 %v251, %v290
    %s292 = sadd.s32 %s31, 52
    %s293 = sld [smem:[#allocation3 + %s292]]
    %s294 = scalar_lea.vmem [#allocation4], %s293
    %v295 = vld [vmem:[%s294] sm:$0x1]
    %v296 = vadd.f32 %v256, %v295
    %s297 = sadd.s32 %s31, 53
    %s298 = sld [smem:[#allocation3 + %s297]]
    %s299 = scalar_lea.vmem [#allocation4], %s298
    %v300 = vld [vmem:[%s299] sm:$0x1]
    %v301 = vadd.f32 %v261, %v300
    %s302 = sadd.s32 %s31, 54
    %s303 = sld [smem:[#allocation3 + %s302]]
    %s304 = scalar_lea.vmem [#allocation4], %s303
    %v305 = vld [vmem:[%s304] sm:$0x1]
    %v306 = vadd.f32 %v266, %v305
    %s307 = sadd.s32 %s31, 55
    %s308 = sld [smem:[#allocation3 + %s307]]
    %s309 = scalar_lea.vmem [#allocation4], %s308
    %v310 = vld [vmem:[%s309] sm:$0x1]
    %v311 = vadd.f32 %v271, %v310
    %s312 = sadd.s32 %s31, 56
    %s313 = sld [smem:[#allocation3 + %s312]]
    %s314 = scalar_lea.vmem [#allocation4], %s313
    %v315 = vld [vmem:[%s314] sm:$0x1]
    %v316 = vadd.f32 %v276, %v315
    %s317 = sadd.s32 %s31, 57
    %s318 = sld [smem:[#allocation3 + %s317]]
    %s319 = scalar_lea.vmem [#allocation4], %s318
    %v320 = vld [vmem:[%s319] sm:$0x1]
    %v321 = vadd.f32 %v281, %v320
    %s322 = sadd.s32 %s31, 58
    %s323 = sld [smem:[#allocation3 + %s322]]
    %s324 = scalar_lea.vmem [#allocation4], %s323
    %v325 = vld [vmem:[%s324] sm:$0x1]
    %v326 = vadd.f32 %v286, %v325
    %s327 = sadd.s32 %s31, 59
    %s328 = sld [smem:[#allocation3 + %s327]]
    %s329 = scalar_lea.vmem [#allocation4], %s328
    %v330 = vld [vmem:[%s329] sm:$0x1]
    %v331 = vadd.f32 %v291, %v330
    %s332 = sadd.s32 %s31, 60
    %s333 = sld [smem:[#allocation3 + %s332]]
    %s334 = scalar_lea.vmem [#allocation4], %s333
    %v335 = vld [vmem:[%s334] sm:$0x1]
    %v336 = vadd.f32 %v296, %v335
    %s337 = sadd.s32 %s31, 61
    %s338 = sld [smem:[#allocation3 + %s337]]
    %s339 = scalar_lea.vmem [#allocation4], %s338
    %v340 = vld [vmem:[%s339] sm:$0x1]
    %v341 = vadd.f32 %v301, %v340
    %s342 = sadd.s32 %s31, 62
    %s343 = sld [smem:[#allocation3 + %s342]]
    %s344 = scalar_lea.vmem [#allocation4], %s343
    %v345 = vld [vmem:[%s344] sm:$0x1]
    %v346 = vadd.f32 %v306, %v345
    %s347 = sadd.s32 %s31, 63
    %s348 = sld [smem:[#allocation3 + %s347]]
    %s349 = scalar_lea.vmem [#allocation4], %s348
    %v350 = vld [vmem:[%s349] sm:$0x1]
    %v351 = vadd.f32 %v311, %v350
    %v353 = vrot.slane %v321, 7
    %v356 = vrot.slane %v326, 6
    %v359 = vrot.slane %v331, 5
    %v362 = vrot.slane %v336, 4
    %v365 = vrot.slane %v341, 3
    %v368 = vrot.slane %v346, 2
    %v371 = vrot.slane %v351, 1
    %vm373 = vcmask 1040384
    %v374 = vsel %vm373, %v316, %v353
    %vm375 = vcmask 1041408
    %v376 = vsel %vm375, %v374, %v356
    %vm377 = vcmask 1042432
    %v378 = vsel %vm377, %v376, %v359
    %vm379 = vcmask 1043456
    %v380 = vsel %vm379, %v378, %v362
    %vm381 = vcmask 1044480
    %v382 = vsel %vm381, %v380, %v365
    %vm383 = vcmask 1045504
    %v384 = vsel %vm383, %v382, %v368
    %vm385 = vcmask 1046528
    %v386 = vsel %vm385, %v384, %v371
    %v387 = vmul.f32 %v386, 0.125
    %v389 = vlaneseq
    %v390 = vshrl.u32 %v389, 7
    %v391 = vsub.s32 0, %v390
    %v392 = vrot.slane %v32, %v391
    %v394 = vadd.f32 %v387, %v392
    %395 = vst [vmem:[#allocation7] sm:$0xff] %v394
    // Predicated region
    $region14: #{tpu_custom_call.1} parent=1 // pred_check
      _
    $region15: #{tpu_custom_call.1} parent=1 // pred_check_branch
      %397 = sbr.rel (0) target = $region17
    $region16: #{tpu_custom_call.1} parent=1 // pred_region
      %s399 = ssub.s32 128, 128
      %400 = vsyncadd [#allocation6], %s399
      %s402 = sshll.u32 [#allocation7], 4
      %s403 = int_to_ptr.vmem [resolvable:$true] %s402
      %405 = dma.vmem_to_hbm [thread:$0]  %s403, 128, %s3, [#allocation6]
    $region17: #{tpu_custom_call.1} parent=1 // pred_fallthru
      _
    // Predicated region
    $region18: #{tpu_custom_call.1} parent=1 // pred_check
      _
    $region19: #{tpu_custom_call.1} parent=1 // pred_check_branch
      %407 = sbr.rel (0) target = $region21
    $region20: #{tpu_custom_call.1} parent=1 // pred_region
      %408 = dma.done [#allocation6], 128
    $region21: #{tpu_custom_call.1} parent=1 // pred_fallthru
      _
    %409 = vsyncpa [#allocation5], 1
    %410 = vsyncpa [#allocation6], 1

// kernel: tpu_custom_call.1
$region0: #{tpu_custom_call.1}
  #allocation0 [shape = 'u32[]', space=smem, size = 0x4, offset = 0x4, fixed_abs, tag = 'smem constant byte address 0x4 - core index']
  #allocation1 [shape = 'u32[144,128]{1,0:T(1,128)}', space=vmem, size = 0x12000, scoped, tag = 'internal scratch']
  #allocation2 [shape = 's32[1]{0}', space=sflag, size = 0x4, scoped, tag = 'scoped memory for tpu_custom_call.1']
  #allocation3 [shape = 'u8[512]{0}', space=smem, size = 0x200, scoped, tag = 'prefetched SMEM operand 0']
  %s0 = inlined_call_operand.hbm [shape: s32[64], index: 0, kind: input, shape index: {}]
  %s1 = inlined_call_operand.hbm [shape: f32[32,128], index: 1, kind: input, shape index: {}]
  %s2 = inlined_call_operand.vmem [shape: f32[1,128], index: 2, kind: input, shape index: {}]
  %s3 = inlined_call_operand.hbm [shape: f32[8,128], index: 3, kind: output, shape index: {}]
  %s4 = sld [smem:[#allocation0]]
  $region22: #{tpu_custom_call.1} parent=0
    _
  %s6 = ssub.s32 1, %s4
  %s7 = scalar_select 0, %s6, %s4
  %9 = dma.hbm_to_smem %s0, 16, [#allocation3], [#allocation2]
  %10 = dma.done [#allocation2], 16
  %11 = sfence
  $region1: #{tpu_custom_call.1} parent=0
    #allocation4 [shape = 'u8[16384]{0}', space=vmem, size = 0x4000, scoped, tag = 'input window, operand 1, single buffered']
    #allocation5 [shape = 's32[1]{0}', space=sflag, size = 0x4, scoped, tag = 'scoped memory for tpu_custom_call.1']
    #allocation6 [shape = 's32[1]{0}', space=sflag, size = 0x4, scoped, tag = 'scoped memory for tpu_custom_call.1']
    #allocation7 [shape = 'u8[4096]{0}', space=vmem, size = 0x1000, scoped, tag = 'output window, operand 0, single buffered']
    %12 = vsyncpa [#allocation5], 0
    %13 = vsyncpa [#allocation6], 0
    // Predicated region
    $region2: #{tpu_custom_call.1} parent=1 // pred_check
      _
    $region3: #{tpu_custom_call.1} parent=1 // pred_check_branch
      %15 = sbr.rel (0) target = $region5
    $region4: #{tpu_custom_call.1} parent=1 // pred_region
      %s17 = ssub.s32 512, 512
      %18 = vsyncadd [#allocation5], %s17
      %s19 = sshll.u32 [#allocation4], 4
      %s20 = int_to_ptr.vmem [resolvable:$true] %s19
      %25 = dma.hbm_to_vmem [thread:$0]  %s1, 512, %s20, [#allocation5], 128, 128, 8
    $region5: #{tpu_custom_call.1} parent=1 // pred_fallthru
      _
    // Predicated region
    $region6: #{tpu_custom_call.1} parent=1 // pred_check
      _
    $region7: #{tpu_custom_call.1} parent=1 // pred_check_branch
      %27 = sbr.rel (0) target = $region9
    $region8: #{tpu_custom_call.1} parent=1 // pred_region
      _
    $region9: #{tpu_custom_call.1} parent=1 // pred_fallthru
      _
    // Predicated region
    $region10: #{tpu_custom_call.1} parent=1 // pred_check
      _
    $region11: #{tpu_custom_call.1} parent=1 // pred_check_branch
      %29 = sbr.rel (0) target = $region13
    $region12: #{tpu_custom_call.1} parent=1 // pred_region
      %30 = dma.done [#allocation5], 512
    $region13: #{tpu_custom_call.1} parent=1 // pred_fallthru
      _
    %s31 = smul.u32 0, 8
    %v32 = vld [vmem:[%s2] sm:$0x1]
    %s33 = sld [smem:[#allocation3 + %s31]]
    %s34 = scalar_lea.vmem [#allocation4], %s33
    %v35 = vld [vmem:[%s34] sm:$0x1]
    %v36 = vadd.f32 %v35, 0.0
    %s37 = sadd.s32 %s31, 1
    %s38 = sld [smem:[#allocation3 + %s37]]
    %s39 = scalar_lea.vmem [#allocation4], %s38
    %v40 = vld [vmem:[%s39] sm:$0x1]
    %v41 = vadd.f32 %v40, 0.0
    %s42 = sadd.s32 %s31, 2
    %s43 = sld [smem:[#allocation3 + %s42]]
    %s44 = scalar_lea.vmem [#allocation4], %s43
    %v45 = vld [vmem:[%s44] sm:$0x1]
    %v46 = vadd.f32 %v45, 0.0
    %s47 = sadd.s32 %s31, 3
    %s48 = sld [smem:[#allocation3 + %s47]]
    %s49 = scalar_lea.vmem [#allocation4], %s48
    %v50 = vld [vmem:[%s49] sm:$0x1]
    %v51 = vadd.f32 %v50, 0.0
    %s52 = sadd.s32 %s31, 4
    %s53 = sld [smem:[#allocation3 + %s52]]
    %s54 = scalar_lea.vmem [#allocation4], %s53
    %v55 = vld [vmem:[%s54] sm:$0x1]
    %v56 = vadd.f32 %v55, 0.0
    %s57 = sadd.s32 %s31, 5
    %s58 = sld [smem:[#allocation3 + %s57]]
    %s59 = scalar_lea.vmem [#allocation4], %s58
    %v60 = vld [vmem:[%s59] sm:$0x1]
    %v61 = vadd.f32 %v60, 0.0
    %s62 = sadd.s32 %s31, 6
    %s63 = sld [smem:[#allocation3 + %s62]]
    %s64 = scalar_lea.vmem [#allocation4], %s63
    %v65 = vld [vmem:[%s64] sm:$0x1]
    %v66 = vadd.f32 %v65, 0.0
    %s67 = sadd.s32 %s31, 7
    %s68 = sld [smem:[#allocation3 + %s67]]
    %s69 = scalar_lea.vmem [#allocation4], %s68
    %v70 = vld [vmem:[%s69] sm:$0x1]
    %v71 = vadd.f32 %v70, 0.0
    %s72 = sadd.s32 %s31, 8
    %s73 = sld [smem:[#allocation3 + %s72]]
    %s74 = scalar_lea.vmem [#allocation4], %s73
    %v75 = vld [vmem:[%s74] sm:$0x1]
    %v76 = vadd.f32 %v36, %v75
    %s77 = sadd.s32 %s31, 9
    %s78 = sld [smem:[#allocation3 + %s77]]
    %s79 = scalar_lea.vmem [#allocation4], %s78
    %v80 = vld [vmem:[%s79] sm:$0x1]
    %v81 = vadd.f32 %v41, %v80
    %s82 = sadd.s32 %s31, 10
    %s83 = sld [smem:[#allocation3 + %s82]]
    %s84 = scalar_lea.vmem [#allocation4], %s83
    %v85 = vld [vmem:[%s84] sm:$0x1]
    %v86 = vadd.f32 %v46, %v85
    %s87 = sadd.s32 %s31, 11
    %s88 = sld [smem:[#allocation3 + %s87]]
    %s89 = scalar_lea.vmem [#allocation4], %s88
    %v90 = vld [vmem:[%s89] sm:$0x1]
    %v91 = vadd.f32 %v51, %v90
    %s92 = sadd.s32 %s31, 12
    %s93 = sld [smem:[#allocation3 + %s92]]
    %s94 = scalar_lea.vmem [#allocation4], %s93
    %v95 = vld [vmem:[%s94] sm:$0x1]
    %v96 = vadd.f32 %v56, %v95
    %s97 = sadd.s32 %s31, 13
    %s98 = sld [smem:[#allocation3 + %s97]]
    %s99 = scalar_lea.vmem [#allocation4], %s98
    %v100 = vld [vmem:[%s99] sm:$0x1]
    %v101 = vadd.f32 %v61, %v100
    %s102 = sadd.s32 %s31, 14
    %s103 = sld [smem:[#allocation3 + %s102]]
    %s104 = scalar_lea.vmem [#allocation4], %s103
    %v105 = vld [vmem:[%s104] sm:$0x1]
    %v106 = vadd.f32 %v66, %v105
    %s107 = sadd.s32 %s31, 15
    %s108 = sld [smem:[#allocation3 + %s107]]
    %s109 = scalar_lea.vmem [#allocation4], %s108
    %v110 = vld [vmem:[%s109] sm:$0x1]
    %v111 = vadd.f32 %v71, %v110
    %s112 = sadd.s32 %s31, 16
    %s113 = sld [smem:[#allocation3 + %s112]]
    %s114 = scalar_lea.vmem [#allocation4], %s113
    %v115 = vld [vmem:[%s114] sm:$0x1]
    %v116 = vadd.f32 %v76, %v115
    %s117 = sadd.s32 %s31, 17
    %s118 = sld [smem:[#allocation3 + %s117]]
    %s119 = scalar_lea.vmem [#allocation4], %s118
    %v120 = vld [vmem:[%s119] sm:$0x1]
    %v121 = vadd.f32 %v81, %v120
    %s122 = sadd.s32 %s31, 18
    %s123 = sld [smem:[#allocation3 + %s122]]
    %s124 = scalar_lea.vmem [#allocation4], %s123
    %v125 = vld [vmem:[%s124] sm:$0x1]
    %v126 = vadd.f32 %v86, %v125
    %s127 = sadd.s32 %s31, 19
    %s128 = sld [smem:[#allocation3 + %s127]]
    %s129 = scalar_lea.vmem [#allocation4], %s128
    %v130 = vld [vmem:[%s129] sm:$0x1]
    %v131 = vadd.f32 %v91, %v130
    %s132 = sadd.s32 %s31, 20
    %s133 = sld [smem:[#allocation3 + %s132]]
    %s134 = scalar_lea.vmem [#allocation4], %s133
    %v135 = vld [vmem:[%s134] sm:$0x1]
    %v136 = vadd.f32 %v96, %v135
    %s137 = sadd.s32 %s31, 21
    %s138 = sld [smem:[#allocation3 + %s137]]
    %s139 = scalar_lea.vmem [#allocation4], %s138
    %v140 = vld [vmem:[%s139] sm:$0x1]
    %v141 = vadd.f32 %v101, %v140
    %s142 = sadd.s32 %s31, 22
    %s143 = sld [smem:[#allocation3 + %s142]]
    %s144 = scalar_lea.vmem [#allocation4], %s143
    %v145 = vld [vmem:[%s144] sm:$0x1]
    %v146 = vadd.f32 %v106, %v145
    %s147 = sadd.s32 %s31, 23
    %s148 = sld [smem:[#allocation3 + %s147]]
    %s149 = scalar_lea.vmem [#allocation4], %s148
    %v150 = vld [vmem:[%s149] sm:$0x1]
    %v151 = vadd.f32 %v111, %v150
    %s152 = sadd.s32 %s31, 24
    %s153 = sld [smem:[#allocation3 + %s152]]
    %s154 = scalar_lea.vmem [#allocation4], %s153
    %v155 = vld [vmem:[%s154] sm:$0x1]
    %v156 = vadd.f32 %v116, %v155
    %s157 = sadd.s32 %s31, 25
    %s158 = sld [smem:[#allocation3 + %s157]]
    %s159 = scalar_lea.vmem [#allocation4], %s158
    %v160 = vld [vmem:[%s159] sm:$0x1]
    %v161 = vadd.f32 %v121, %v160
    %s162 = sadd.s32 %s31, 26
    %s163 = sld [smem:[#allocation3 + %s162]]
    %s164 = scalar_lea.vmem [#allocation4], %s163
    %v165 = vld [vmem:[%s164] sm:$0x1]
    %v166 = vadd.f32 %v126, %v165
    %s167 = sadd.s32 %s31, 27
    %s168 = sld [smem:[#allocation3 + %s167]]
    %s169 = scalar_lea.vmem [#allocation4], %s168
    %v170 = vld [vmem:[%s169] sm:$0x1]
    %v171 = vadd.f32 %v131, %v170
    %s172 = sadd.s32 %s31, 28
    %s173 = sld [smem:[#allocation3 + %s172]]
    %s174 = scalar_lea.vmem [#allocation4], %s173
    %v175 = vld [vmem:[%s174] sm:$0x1]
    %v176 = vadd.f32 %v136, %v175
    %s177 = sadd.s32 %s31, 29
    %s178 = sld [smem:[#allocation3 + %s177]]
    %s179 = scalar_lea.vmem [#allocation4], %s178
    %v180 = vld [vmem:[%s179] sm:$0x1]
    %v181 = vadd.f32 %v141, %v180
    %s182 = sadd.s32 %s31, 30
    %s183 = sld [smem:[#allocation3 + %s182]]
    %s184 = scalar_lea.vmem [#allocation4], %s183
    %v185 = vld [vmem:[%s184] sm:$0x1]
    %v186 = vadd.f32 %v146, %v185
    %s187 = sadd.s32 %s31, 31
    %s188 = sld [smem:[#allocation3 + %s187]]
    %s189 = scalar_lea.vmem [#allocation4], %s188
    %v190 = vld [vmem:[%s189] sm:$0x1]
    %v191 = vadd.f32 %v151, %v190
    %s192 = sadd.s32 %s31, 32
    %s193 = sld [smem:[#allocation3 + %s192]]
    %s194 = scalar_lea.vmem [#allocation4], %s193
    %v195 = vld [vmem:[%s194] sm:$0x1]
    %v196 = vadd.f32 %v156, %v195
    %s197 = sadd.s32 %s31, 33
    %s198 = sld [smem:[#allocation3 + %s197]]
    %s199 = scalar_lea.vmem [#allocation4], %s198
    %v200 = vld [vmem:[%s199] sm:$0x1]
    %v201 = vadd.f32 %v161, %v200
    %s202 = sadd.s32 %s31, 34
    %s203 = sld [smem:[#allocation3 + %s202]]
    %s204 = scalar_lea.vmem [#allocation4], %s203
    %v205 = vld [vmem:[%s204] sm:$0x1]
    %v206 = vadd.f32 %v166, %v205
    %s207 = sadd.s32 %s31, 35
    %s208 = sld [smem:[#allocation3 + %s207]]
    %s209 = scalar_lea.vmem [#allocation4], %s208
    %v210 = vld [vmem:[%s209] sm:$0x1]
    %v211 = vadd.f32 %v171, %v210
    %s212 = sadd.s32 %s31, 36
    %s213 = sld [smem:[#allocation3 + %s212]]
    %s214 = scalar_lea.vmem [#allocation4], %s213
    %v215 = vld [vmem:[%s214] sm:$0x1]
    %v216 = vadd.f32 %v176, %v215
    %s217 = sadd.s32 %s31, 37
    %s218 = sld [smem:[#allocation3 + %s217]]
    %s219 = scalar_lea.vmem [#allocation4], %s218
    %v220 = vld [vmem:[%s219] sm:$0x1]
    %v221 = vadd.f32 %v181, %v220
    %s222 = sadd.s32 %s31, 38
    %s223 = sld [smem:[#allocation3 + %s222]]
    %s224 = scalar_lea.vmem [#allocation4], %s223
    %v225 = vld [vmem:[%s224] sm:$0x1]
    %v226 = vadd.f32 %v186, %v225
    %s227 = sadd.s32 %s31, 39
    %s228 = sld [smem:[#allocation3 + %s227]]
    %s229 = scalar_lea.vmem [#allocation4], %s228
    %v230 = vld [vmem:[%s229] sm:$0x1]
    %v231 = vadd.f32 %v191, %v230
    %s232 = sadd.s32 %s31, 40
    %s233 = sld [smem:[#allocation3 + %s232]]
    %s234 = scalar_lea.vmem [#allocation4], %s233
    %v235 = vld [vmem:[%s234] sm:$0x1]
    %v236 = vadd.f32 %v196, %v235
    %s237 = sadd.s32 %s31, 41
    %s238 = sld [smem:[#allocation3 + %s237]]
    %s239 = scalar_lea.vmem [#allocation4], %s238
    %v240 = vld [vmem:[%s239] sm:$0x1]
    %v241 = vadd.f32 %v201, %v240
    %s242 = sadd.s32 %s31, 42
    %s243 = sld [smem:[#allocation3 + %s242]]
    %s244 = scalar_lea.vmem [#allocation4], %s243
    %v245 = vld [vmem:[%s244] sm:$0x1]
    %v246 = vadd.f32 %v206, %v245
    %s247 = sadd.s32 %s31, 43
    %s248 = sld [smem:[#allocation3 + %s247]]
    %s249 = scalar_lea.vmem [#allocation4], %s248
    %v250 = vld [vmem:[%s249] sm:$0x1]
    %v251 = vadd.f32 %v211, %v250
    %s252 = sadd.s32 %s31, 44
    %s253 = sld [smem:[#allocation3 + %s252]]
    %s254 = scalar_lea.vmem [#allocation4], %s253
    %v255 = vld [vmem:[%s254] sm:$0x1]
    %v256 = vadd.f32 %v216, %v255
    %s257 = sadd.s32 %s31, 45
    %s258 = sld [smem:[#allocation3 + %s257]]
    %s259 = scalar_lea.vmem [#allocation4], %s258
    %v260 = vld [vmem:[%s259] sm:$0x1]
    %v261 = vadd.f32 %v221, %v260
    %s262 = sadd.s32 %s31, 46
    %s263 = sld [smem:[#allocation3 + %s262]]
    %s264 = scalar_lea.vmem [#allocation4], %s263
    %v265 = vld [vmem:[%s264] sm:$0x1]
    %v266 = vadd.f32 %v226, %v265
    %s267 = sadd.s32 %s31, 47
    %s268 = sld [smem:[#allocation3 + %s267]]
    %s269 = scalar_lea.vmem [#allocation4], %s268
    %v270 = vld [vmem:[%s269] sm:$0x1]
    %v271 = vadd.f32 %v231, %v270
    %s272 = sadd.s32 %s31, 48
    %s273 = sld [smem:[#allocation3 + %s272]]
    %s274 = scalar_lea.vmem [#allocation4], %s273
    %v275 = vld [vmem:[%s274] sm:$0x1]
    %v276 = vadd.f32 %v236, %v275
    %s277 = sadd.s32 %s31, 49
    %s278 = sld [smem:[#allocation3 + %s277]]
    %s279 = scalar_lea.vmem [#allocation4], %s278
    %v280 = vld [vmem:[%s279] sm:$0x1]
    %v281 = vadd.f32 %v241, %v280
    %s282 = sadd.s32 %s31, 50
    %s283 = sld [smem:[#allocation3 + %s282]]
    %s284 = scalar_lea.vmem [#allocation4], %s283
    %v285 = vld [vmem:[%s284] sm:$0x1]
    %v286 = vadd.f32 %v246, %v285
    %s287 = sadd.s32 %s31, 51
    %s288 = sld [smem:[#allocation3 + %s287]]
    %s289 = scalar_lea.vmem [#allocation4], %s288
    %v290 = vld [vmem:[%s289] sm:$0x1]
    %v291 = vadd.f32 %v251, %v290
    %s292 = sadd.s32 %s31, 52
    %s293 = sld [smem:[#allocation3 + %s292]]
    %s294 = scalar_lea.vmem [#allocation4], %s293
    %v295 = vld [vmem:[%s294] sm:$0x1]
    %v296 = vadd.f32 %v256, %v295
    %s297 = sadd.s32 %s31, 53
    %s298 = sld [smem:[#allocation3 + %s297]]
    %s299 = scalar_lea.vmem [#allocation4], %s298
    %v300 = vld [vmem:[%s299] sm:$0x1]
    %v301 = vadd.f32 %v261, %v300
    %s302 = sadd.s32 %s31, 54
    %s303 = sld [smem:[#allocation3 + %s302]]
    %s304 = scalar_lea.vmem [#allocation4], %s303
    %v305 = vld [vmem:[%s304] sm:$0x1]
    %v306 = vadd.f32 %v266, %v305
    %s307 = sadd.s32 %s31, 55
    %s308 = sld [smem:[#allocation3 + %s307]]
    %s309 = scalar_lea.vmem [#allocation4], %s308
    %v310 = vld [vmem:[%s309] sm:$0x1]
    %v311 = vadd.f32 %v271, %v310
    %s312 = sadd.s32 %s31, 56
    %s313 = sld [smem:[#allocation3 + %s312]]
    %s314 = scalar_lea.vmem [#allocation4], %s313
    %v315 = vld [vmem:[%s314] sm:$0x1]
    %v316 = vadd.f32 %v276, %v315
    %s317 = sadd.s32 %s31, 57
    %s318 = sld [smem:[#allocation3 + %s317]]
    %s319 = scalar_lea.vmem [#allocation4], %s318
    %v320 = vld [vmem:[%s319] sm:$0x1]
    %v321 = vadd.f32 %v281, %v320
    %s322 = sadd.s32 %s31, 58
    %s323 = sld [smem:[#allocation3 + %s322]]
    %s324 = scalar_lea.vmem [#allocation4], %s323
    %v325 = vld [vmem:[%s324] sm:$0x1]
    %v326 = vadd.f32 %v286, %v325
    %s327 = sadd.s32 %s31, 59
    %s328 = sld [smem:[#allocation3 + %s327]]
    %s329 = scalar_lea.vmem [#allocation4], %s328
    %v330 = vld [vmem:[%s329] sm:$0x1]
    %v331 = vadd.f32 %v291, %v330
    %s332 = sadd.s32 %s31, 60
    %s333 = sld [smem:[#allocation3 + %s332]]
    %s334 = scalar_lea.vmem [#allocation4], %s333
    %v335 = vld [vmem:[%s334] sm:$0x1]
    %v336 = vadd.f32 %v296, %v335
    %s337 = sadd.s32 %s31, 61
    %s338 = sld [smem:[#allocation3 + %s337]]
    %s339 = scalar_lea.vmem [#allocation4], %s338
    %v340 = vld [vmem:[%s339] sm:$0x1]
    %v341 = vadd.f32 %v301, %v340
    %s342 = sadd.s32 %s31, 62
    %s343 = sld [smem:[#allocation3 + %s342]]
    %s344 = scalar_lea.vmem [#allocation4], %s343
    %v345 = vld [vmem:[%s344] sm:$0x1]
    %v346 = vadd.f32 %v306, %v345
    %s347 = sadd.s32 %s31, 63
    %s348 = sld [smem:[#allocation3 + %s347]]
    %s349 = scalar_lea.vmem [#allocation4], %s348
    %v350 = vld [vmem:[%s349] sm:$0x1]
    %v351 = vadd.f32 %v311, %v350
    %v353 = vrot.slane %v321, 7
    %v356 = vrot.slane %v326, 6
    %v359 = vrot.slane %v331, 5
    %v362 = vrot.slane %v336, 4
    %v365 = vrot.slane %v341, 3
    %v368 = vrot.slane %v346, 2
    %v371 = vrot.slane %v351, 1
    %vm373 = vcmask 1040384
    %v374 = vsel %vm373, %v316, %v353
    %vm375 = vcmask 1041408
    %v376 = vsel %vm375, %v374, %v356
    %vm377 = vcmask 1042432
    %v378 = vsel %vm377, %v376, %v359
    %vm379 = vcmask 1043456
    %v380 = vsel %vm379, %v378, %v362
    %vm381 = vcmask 1044480
    %v382 = vsel %vm381, %v380, %v365
    %vm383 = vcmask 1045504
    %v384 = vsel %vm383, %v382, %v368
    %vm385 = vcmask 1046528
    %v386 = vsel %vm385, %v384, %v371
    %v387 = vmul.f32 %v386, 0.125
    %v389 = vlaneseq
    %v390 = vshrl.u32 %v389, 7
    %v391 = vsub.s32 0, %v390
    %v392 = vrot.slane %v32, %v391
    %v394 = vadd.f32 %v387, %v392
    %395 = vst [vmem:[#allocation7] sm:$0xff] %v394
    // Predicated region
    $region14: #{tpu_custom_call.1} parent=1 // pred_check
      _
    $region15: #{tpu_custom_call.1} parent=1 // pred_check_branch
      %397 = sbr.rel (0) target = $region17
    $region16: #{tpu_custom_call.1} parent=1 // pred_region
      %s399 = ssub.s32 128, 128
      %400 = vsyncadd [#allocation6], %s399
      %s402 = sshll.u32 [#allocation7], 4
      %s403 = int_to_ptr.vmem [resolvable:$true] %s402
      %405 = dma.vmem_to_hbm [thread:$0]  %s403, 128, %s3, [#allocation6]
    $region17: #{tpu_custom_call.1} parent=1 // pred_fallthru
      _
    // Predicated region
    $region18: #{tpu_custom_call.1} parent=1 // pred_check
      _
    $region19: #{tpu_custom_call.1} parent=1 // pred_check_branch
      %407 = sbr.rel (0) target = $region21
    $region20: #{tpu_custom_call.1} parent=1 // pred_region
      %408 = dma.done [#allocation6], 128
    $region21: #{tpu_custom_call.1} parent=1 // pred_fallthru
      _
    %409 = vsyncpa [#allocation5], 1
    %410 = vsyncpa [#allocation6], 1

</llo_original>
